<compile_context>
chip_gen: v7x
topology: tpu7x:2x2x1
jax: 0.10.0
libtpu: 0.0.40
codegen_flags: <defaults>
</compile_context>

<pallas_src>
import functools

import numpy as np
import jax
import jax.numpy as jnp
from jax.experimental import pallas as pl
from jax.experimental.pallas import tpu as pltpu

EPS = 1e-8
LANE = 128
DIM = 64  # the module hard-codes 64-d embeddings

# Compiler-params class (name changed across JAX versions).
_CompilerParams = getattr(pltpu, "CompilerParams", None)
if _CompilerParams is None:  # pragma: no cover - older JAX fallback
    _CompilerParams = getattr(pltpu, "TPUCompilerParams")


# ----------------------------- graph construction (glue, plain numpy) --------
def build_adj_graph(ui_graph: np.ndarray) -> np.ndarray:
    """Dense equivalent of sp.bmat([[0, ui],[ui.T, 0]]) + laplace_transform."""
    n_user, n_item = ui_graph.shape
    n = n_user + n_item
    graph = np.zeros((n, n), dtype=np.float32)
    graph[:n_user, n_user:] = ui_graph
    graph[n_user:, :n_user] = ui_graph.T
    row_norm = np.sqrt(graph.sum(axis=1))
    col_norm = np.sqrt(graph.sum(axis=0))
    graph = (1.0 / (row_norm + EPS))[:, None] * graph * (1.0 / (col_norm + EPS))[None, :]
    return graph.astype(np.float32)


# ----------------------------- tiling / VMEM helpers --------------------------
def _round_up(x: int, m: int) -> int:
    return (x + m - 1) // m * m


def _vmem_budget() -> int:
    """Generation-aware usable-VMEM budget in bytes."""
    try:
        cap = int(pltpu.get_tpu_info().vmem_capacity_bytes)
    except Exception:
        cap = 64 << 20  # conservative (v7x-sized) fallback
    if cap <= (64 << 20):          # v7x: 64 MiB/TC physical -> keep ~48 MiB
        return max(cap - (16 << 20), 32 << 20)
    # v5e/v6e: 128 MiB physical -> allow ~100+ MiB for large tiles
    return min(cap - (24 << 20), 112 << 20)


def _tile_candidates(n_pad: int, cap: int):
    hi = min(n_pad, cap)
    return [t for t in range(hi, 127, -128) if n_pad % t == 0]


def _tiling(n_pad: int, d: int, budget: int):
    """Pick (TM, TK) as the largest lane-aligned divisors of n_pad that fit VMEM."""
    resident = 2 * n_pad * d * 2          # double-buffered bf16 resident features
    margin = 4 << 20                      # epilogue row blocks, acc, compiler slack
    avail = budget - resident - margin
    if avail < 2 * 128 * 128 * 2:
        raise ValueError(
            f"Resident feature operand ({resident / 2**20:.1f} MiB) does not fit the "
            f"VMEM budget ({budget / 2**20:.1f} MiB) for N_pad={n_pad}; this graph "
            "size needs a sparse / blocked-feature formulation."
        )

    # TM: prefer an even row-block count >= 4 (load-balances v7x's two TensorCores).
    tm_cands = _tile_candidates(n_pad, 1024)
    tm = tm_cands[-1]
    for pred in (
        lambda t: (n_pad // t) >= 4 and (n_pad // t) % 2 == 0,
        lambda t: (n_pad // t) >= 4,
        lambda t: (n_pad // t) >= 2,
        lambda t: True,
    ):
        sel = [t for t in tm_cands if pred(t)]
        if sel:
            tm = sel[0]
            break

    # TK: largest divisor whose double-buffered bf16 A tiles fit the remaining budget.
    tk = 128
    for t in _tile_candidates(n_pad, 2048):
        if 2 * tm * t * 2 <= avail:
            tk = t
            break
    return tm, tk


def _vmem_limit(n_pad: int, tm: int, tk: int, d: int, budget: int) -> int:
    a_tiles = 2 * tm * tk * 2              # double-buffered bf16 A tiles
    resident = 2 * n_pad * d * 2           # double-buffered bf16 resident features
    row_blocks = 2 * tm * d * 4 + 2 * tm * d * 2   # f32 f0 + bf16 f1 epilogue blocks
    out_blocks = 2 * tm * d * 4            # f32 output block (pass 2)
    acc = tm * d * 4
    need = a_tiles + resident + row_blocks + out_blocks + acc + (2 << 20)
    return int(min(max(need, 8 << 20), budget))


# ----------------------------- Pallas kernels ---------------------------------
def _spmm_kernel(a_ref, feat_ref, out_ref, acc_ref, *, tk):
    """One (TM, 64) row block of  out = A @ feat,  accumulated over the K axis."""
    k = pl.program_id(1)

    @pl.when(k == 0)
    def _():
        acc_ref[...] = jnp.zeros_like(acc_ref)

    k0 = pl.multiple_of(k * tk, tk)
    acc_ref[...] += jnp.dot(
        a_ref[...], feat_ref[pl.ds(k0, tk), :], preferred_element_type=jnp.float32
    )

    @pl.when(k == pl.num_programs(1) - 1)
    def _():
        out_ref[...] = acc_ref[...].astype(out_ref.dtype)


def _spmm_mean_kernel(a_ref, feat_ref, f0_row_ref, f1_row_ref, out_ref, acc_ref, *, tk):
    """out = (f0 + f1 + A @ f1) / 3, mean fused into the last-k writeback."""
    k = pl.program_id(1)

    @pl.when(k == 0)
    def _():
        acc_ref[...] = jnp.zeros_like(acc_ref)

    k0 = pl.multiple_of(k * tk, tk)
    acc_ref[...] += jnp.dot(
        a_ref[...], feat_ref[pl.ds(k0, tk), :], preferred_element_type=jnp.float32
    )

    @pl.when(k == pl.num_programs(1) - 1)
    def _():
        out_ref[...] = (
            (f0_row_ref[...] + f1_row_ref[...].astype(jnp.float32) + acc_ref[...])
            * (1.0 / 3.0)
        ).astype(out_ref.dtype)


# ----------------------------- propagation wrapper ----------------------------
@jax.jit
def lightgcn_propagate(adj_p: jnp.ndarray, features: jnp.ndarray) -> jnp.ndarray:
    """2-layer LightGCN propagation + mean: (f0 + A f0 + A^2 f0) / 3.

    adj_p:    [N_pad, N_pad] bf16 normalized adjacency (pre-padded, pre-cast).
    features: [N, 64] f32 node embeddings.
    """
    n, d = features.shape
    n_pad = adj_p.shape[0]
    budget = _vmem_budget()
    tm, tk = _tiling(n_pad, d, budget)
    vmem_limit = _vmem_limit(n_pad, tm, tk, d, budget)
    grid = (n_pad // tm, n_pad // tk)

    pad_n = n_pad - n
    f0_f32 = jnp.pad(features.astype(jnp.float32), ((0, pad_n), (0, 0)))
    f0_bf16 = f0_f32.astype(jnp.bfloat16)   # dot operand is already bf16 (no in-kernel cast)

    cparams = _CompilerParams(
        dimension_semantics=("parallel", "arbitrary"),
        vmem_limit_bytes=vmem_limit,
    )

    # ---- pass 1: f1 = A @ f0  (bf16 output so pass 2 consumes it directly) ----
    f1_bf16 = pl.pallas_call(
        functools.partial(_spmm_kernel, tk=tk),
        out_shape=jax.ShapeDtypeStruct((n_pad, d), jnp.bfloat16),
        grid_spec=pltpu.PrefetchScalarGridSpec(
            num_scalar_prefetch=0,
            grid=grid,
            in_specs=[
                pl.BlockSpec((tm, tk), lambda i, k: (i, k)),      # A tile (streamed, bf16)
                pl.BlockSpec((n_pad, d), lambda i, k: (0, 0)),    # f0 (fully resident, bf16)
            ],
            out_specs=pl.BlockSpec((tm, d), lambda i, k: (i, 0)),
            scratch_shapes=[pltpu.VMEM((tm, d), jnp.float32)],
        ),
        compiler_params=cparams,
    )(adj_p, f0_bf16)

    # ---- pass 2: out = (f0 + f1 + A @ f1) / 3 ---------------------------------
    out_p = pl.pallas_call(
        functools.partial(_spmm_mean_kernel, tk=tk),
        out_shape=jax.ShapeDtypeStruct((n_pad, d), jnp.float32),
        grid_spec=pltpu.PrefetchScalarGridSpec(
            num_scalar_prefetch=0,
            grid=grid,
            in_specs=[
                pl.BlockSpec((tm, tk), lambda i, k: (i, k)),      # A tile (streamed, bf16)
                pl.BlockSpec((n_pad, d), lambda i, k: (0, 0)),    # f1 (fully resident, bf16)
                pl.BlockSpec((tm, d), lambda i, k: (i, 0)),       # f0 row block (f32 epilogue)
                pl.BlockSpec((tm, d), lambda i, k: (i, 0)),       # f1 row block (bf16 epilogue)
            ],
            out_specs=pl.BlockSpec((tm, d), lambda i, k: (i, 0)),
            scratch_shapes=[pltpu.VMEM((tm, d), jnp.float32)],
        ),
        compiler_params=cparams,
    )(adj_p, f1_bf16, f0_f32, f1_bf16)

    return out_p[:n]


# ----------------------------- module wrapper ---------------------------------
class LightGCNPallas:
    def __init__(self, n_user, n_item, ui_graph, key):
        self.n_user = n_user
        self.n_item = n_item
        self.dim = DIM
        k_u, k_i = jax.random.split(key)
        # xavier_normal_: std = sqrt(2 / (fan_in + fan_out))
        std_u = np.sqrt(2.0 / (n_user + self.dim))
        std_i = np.sqrt(2.0 / (n_item + self.dim))
        self.user_emb = (std_u * jax.random.normal(k_u, (n_user, self.dim))).astype(jnp.float32)
        self.item_emb = (std_i * jax.random.normal(k_i, (n_item, self.dim))).astype(jnp.float32)

        adj = build_adj_graph(ui_graph)          # f32 normalized adjacency [N, N]
        self.adj_graph = jnp.asarray(adj)        # kept in f32 for the reference check

        # Perf: pad + bf16-cast the static adjacency ONCE, outside the jitted hot path.
        n = n_user + n_item
        n_pad = _round_up(n, LANE)
        adj_pad = np.zeros((n_pad, n_pad), dtype=np.float32)
        adj_pad[:n, :n] = adj
        self.adj_p = jnp.asarray(adj_pad).astype(jnp.bfloat16)

        self.n_layer = 2

    def forward(self, user, pos_item, neg_item):
        features = jnp.concatenate([self.user_emb, self.item_emb], axis=0)  # [N, 64]
        all_feat = lightgcn_propagate(self.adj_p, features)                 # Pallas hot path
        user_feat = all_feat[: self.n_user]
        item_feat = all_feat[self.n_user:]
        # Row gathers are glue (plain JAX indexing).
        return user_feat[user], item_feat[pos_item], item_feat[neg_item]


# ----------------------------- reference (pure JAX, f32) ----------------------
def reference_forward(model, user, pos_item, neg_item):
    f0 = jnp.concatenate([model.user_emb, model.item_emb], axis=0)
    f1 = model.adj_graph @ f0
    f2 = model.adj_graph @ f1
    all_feat = (f0 + f1 + f2) / 3.0
    u = all_feat[: model.n_user]
    i = all_feat[model.n_user:]
    return u[user], i[pos_item], i[neg_item]


if __name__ == "__main__":
    key = jax.random.PRNGKey(0)
    k_graph, k_emb, k_idx = jax.random.split(key, 3)

    # Small but non-trivial: N = 384 nodes -> padded to 384, row grid of 3 blocks.
    n_user, n_item, batch = 192, 192, 8
    ui_graph = (jax.random.uniform(k_graph, (n_user, n_item)) < 0.1).astype(jnp.float32)
    ui_graph = np.asarray(ui_graph)

    model = LightGCNPallas(n_user, n_item, ui_graph, k_emb)

    ku, kp, kn = jax.random.split(k_idx, 3)
    user = jax.random.randint(ku, (batch,), 0, n_user)
    pos_item = jax.random.randint(kp, (batch,), 0, n_item)
    neg_item = jax.random.randint(kn, (batch,), 0, n_item)

    u_out, p_out, n_out = model.forward(user, pos_item, neg_item)
    jax.block_until_ready((u_out, p_out, n_out))

    # Sanity check vs. f32 reference (tolerance relaxed for bf16 adjacency/features).
    u_ref, p_ref, n_ref = reference_forward(model, user, pos_item, neg_item)
    np.testing.assert_allclose(np.asarray(u_out), np.asarray(u_ref), rtol=2e-2, atol=2e-3)
    np.testing.assert_allclose(np.asarray(p_out), np.asarray(p_ref), rtol=2e-2, atol=2e-3)
    np.testing.assert_allclose(np.asarray(n_out), np.asarray(n_ref), rtol=2e-2, atol=2e-3)

    print("KERNEL_OK")
</pallas_src>

<mosaic_0001>
module attributes {stable_mosaic.version = 11 : i64} {
  func.func @_spmm_kernel(%arg0: i32, %arg1: i32, %arg2: memref<128x384xbf16, #tpu.memory_space<vmem>>, %arg3: memref<384x64xbf16, #tpu.memory_space<vmem>>, %arg4: memref<128x64xbf16, #tpu.memory_space<vmem>>, %arg5: memref<128x64xf32, #tpu.memory_space<vmem>>) attributes {dimension_semantics = [#tpu.dimension_semantics<parallel>, #tpu.dimension_semantics<arbitrary>], iteration_bounds = array<i64: 3, 1>, scalar_prefetch = 0 : i64, scratch_operands = 1 : i64, tpu.core_type = #tpu.core_type<tc>, window_params = [{transform_indices = @transform_0, window_bounds = array<i64: 128, 384>}, {pipeline_mode = #tpu.pipeline_mode<synchronous>, transform_indices = @transform_1, window_bounds = array<i64: 384, 64>}, {transform_indices = @transform_2, window_bounds = array<i64: 128, 64>}]} {
    %c0_i32 = arith.constant 0 : i32
    %0 = arith.cmpi eq, %arg1, %c0_i32 : i32
    %1 = arith.extui %0 : i1 to i32
    %c0_i32_0 = arith.constant 0 : i32
    %2 = arith.cmpi ne, %1, %c0_i32_0 : i32
    scf.if %2 {
      %cst_9 = arith.constant 0.000000e+00 : f32
      %15 = vector.broadcast %cst_9 : f32 to vector<128x64xf32>
      %c0_10 = arith.constant 0 : index
      %c0_11 = arith.constant 0 : index
      %16 = vector.load %arg5[%c0_10, %c0_11] : memref<128x64xf32, #tpu.memory_space<vmem>>, vector<128x64xf32>
      tpu.vector_store %arg5[%c0_10, %c0_11], %15 {strides = array<i32>} : memref<128x64xf32, #tpu.memory_space<vmem>>, vector<128x64xf32>,
    } else {
    }
    %c384_i32 = arith.constant 384 : i32
    %3 = arith.muli %arg1, %c384_i32 : i32
    %4 = tpu.assume_multiple %3, 384 : i32
    %c0 = arith.constant 0 : index
    %c0_1 = arith.constant 0 : index
    %5 = vector.load %arg5[%c0, %c0_1] : memref<128x64xf32, #tpu.memory_space<vmem>>, vector<128x64xf32>
    %c0_2 = arith.constant 0 : index
    %c0_3 = arith.constant 0 : index
    %6 = vector.load %arg2[%c0_2, %c0_3] : memref<128x384xbf16, #tpu.memory_space<vmem>>, vector<128x384xbf16>
    %7 = arith.index_cast %4 : i32 to index
    %c0_4 = arith.constant 0 : index
    %8 = vector.load %arg3[%7, %c0_4] : memref<384x64xbf16, #tpu.memory_space<vmem>>, vector<384x64xbf16>
    %cst = arith.constant dense<0.000000e+00> : vector<128x64xf32>
    %9 = tpu.matmul %6, %8, %cst {dimension_numbers = #tpu.dot_dimension_numbers<[1], [0], [0], [1], [0, 0, 1, 1], [], []>} : vector<128x384xbf16>, vector<384x64xbf16>, vector<128x64xf32> -> vector<128x64xf32>
    %10 = arith.addf %5, %9 : vector<128x64xf32>
    %c0_5 = arith.constant 0 : index
    %c0_6 = arith.constant 0 : index
    %11 = vector.load %arg5[%c0_5, %c0_6] : memref<128x64xf32, #tpu.memory_space<vmem>>, vector<128x64xf32>
    tpu.vector_store %arg5[%c0_5, %c0_6], %10 {strides = array<i32>} : memref<128x64xf32, #tpu.memory_space<vmem>>, vector<128x64xf32>,
    %c0_i32_7 = arith.constant 0 : i32
    %12 = arith.cmpi eq, %arg1, %c0_i32_7 : i32
    %13 = arith.extui %12 : i1 to i32
    %c0_i32_8 = arith.constant 0 : i32
    %14 = arith.cmpi ne, %13, %c0_i32_8 : i32
    scf.if %14 {
      %c0_9 = arith.constant 0 : index
      %c0_10 = arith.constant 0 : index
      %15 = vector.load %arg5[%c0_9, %c0_10] : memref<128x64xf32, #tpu.memory_space<vmem>>, vector<128x64xf32>
      %16 = arith.truncf %15 : vector<128x64xf32> to vector<128x64xbf16>
      %c0_11 = arith.constant 0 : index
      %c0_12 = arith.constant 0 : index
      %17 = vector.load %arg4[%c0_11, %c0_12] : memref<128x64xbf16, #tpu.memory_space<vmem>>, vector<128x64xbf16>
      tpu.vector_store %arg4[%c0_11, %c0_12], %16 {strides = array<i32>} : memref<128x64xbf16, #tpu.memory_space<vmem>>, vector<128x64xbf16>,
    } else {
    }
    return
  }
  func.func @transform_0(%arg0: i32, %arg1: i32) -> (i32, i32) {
    %c0_i32 = arith.constant 0 : i32
    return %arg0, %arg1 : i32, i32
  }
  func.func @transform_1(%arg0: i32, %arg1: i32) -> (i32, i32) {
    %c0_i32 = arith.constant 0 : i32
    %c0_i32_0 = arith.constant 0 : i32
    %c0_i32_1 = arith.constant 0 : i32
    return %c0_i32, %c0_i32_0 : i32, i32
  }
  func.func @transform_2(%arg0: i32, %arg1: i32) -> (i32, i32) {
    %c0_i32 = arith.constant 0 : i32
    %c0_i32_0 = arith.constant 0 : i32
    return %arg0, %c0_i32 : i32, i32
  }
}

module attributes {stable_mosaic.version = 11 : i64} {
  func.func @_spmm_mean_kernel(%arg0: i32, %arg1: i32, %arg2: memref<128x384xbf16, #tpu.memory_space<vmem>>, %arg3: memref<384x64xbf16, #tpu.memory_space<vmem>>, %arg4: memref<128x64xf32, #tpu.memory_space<vmem>>, %arg5: memref<128x64xbf16, #tpu.memory_space<vmem>>, %arg6: memref<128x64xf32, #tpu.memory_space<vmem>>, %arg7: memref<128x64xf32, #tpu.memory_space<vmem>>) attributes {dimension_semantics = [#tpu.dimension_semantics<parallel>, #tpu.dimension_semantics<arbitrary>], iteration_bounds = array<i64: 3, 1>, scalar_prefetch = 0 : i64, scratch_operands = 1 : i64, tpu.core_type = #tpu.core_type<tc>, window_params = [{transform_indices = @transform_0, window_bounds = array<i64: 128, 384>}, {pipeline_mode = #tpu.pipeline_mode<synchronous>, transform_indices = @transform_1, window_bounds = array<i64: 384, 64>}, {transform_indices = @transform_2, window_bounds = array<i64: 128, 64>}, {transform_indices = @transform_3, window_bounds = array<i64: 128, 64>}, {transform_indices = @transform_4, window_bounds = array<i64: 128, 64>}]} {
    %c0_i32 = arith.constant 0 : i32
    %0 = arith.cmpi eq, %arg1, %c0_i32 : i32
    %1 = arith.extui %0 : i1 to i32
    %c0_i32_0 = arith.constant 0 : i32
    %2 = arith.cmpi ne, %1, %c0_i32_0 : i32
    scf.if %2 {
      %cst_9 = arith.constant 0.000000e+00 : f32
      %15 = vector.broadcast %cst_9 : f32 to vector<128x64xf32>
      %c0_10 = arith.constant 0 : index
      %c0_11 = arith.constant 0 : index
      %16 = vector.load %arg7[%c0_10, %c0_11] : memref<128x64xf32, #tpu.memory_space<vmem>>, vector<128x64xf32>
      tpu.vector_store %arg7[%c0_10, %c0_11], %15 {strides = array<i32>} : memref<128x64xf32, #tpu.memory_space<vmem>>, vector<128x64xf32>,
    } else {
    }
    %c384_i32 = arith.constant 384 : i32
    %3 = arith.muli %arg1, %c384_i32 : i32
    %4 = tpu.assume_multiple %3, 384 : i32
    %c0 = arith.constant 0 : index
    %c0_1 = arith.constant 0 : index
    %5 = vector.load %arg7[%c0, %c0_1] : memref<128x64xf32, #tpu.memory_space<vmem>>, vector<128x64xf32>
    %c0_2 = arith.constant 0 : index
    %c0_3 = arith.constant 0 : index
    %6 = vector.load %arg2[%c0_2, %c0_3] : memref<128x384xbf16, #tpu.memory_space<vmem>>, vector<128x384xbf16>
    %7 = arith.index_cast %4 : i32 to index
    %c0_4 = arith.constant 0 : index
    %8 = vector.load %arg3[%7, %c0_4] : memref<384x64xbf16, #tpu.memory_space<vmem>>, vector<384x64xbf16>
    %cst = arith.constant dense<0.000000e+00> : vector<128x64xf32>
    %9 = tpu.matmul %6, %8, %cst {dimension_numbers = #tpu.dot_dimension_numbers<[1], [0], [0], [1], [0, 0, 1, 1], [], []>} : vector<128x384xbf16>, vector<384x64xbf16>, vector<128x64xf32> -> vector<128x64xf32>
    %10 = arith.addf %5, %9 : vector<128x64xf32>
    %c0_5 = arith.constant 0 : index
    %c0_6 = arith.constant 0 : index
    %11 = vector.load %arg7[%c0_5, %c0_6] : memref<128x64xf32, #tpu.memory_space<vmem>>, vector<128x64xf32>
    tpu.vector_store %arg7[%c0_5, %c0_6], %10 {strides = array<i32>} : memref<128x64xf32, #tpu.memory_space<vmem>>, vector<128x64xf32>,
    %c0_i32_7 = arith.constant 0 : i32
    %12 = arith.cmpi eq, %arg1, %c0_i32_7 : i32
    %13 = arith.extui %12 : i1 to i32
    %c0_i32_8 = arith.constant 0 : i32
    %14 = arith.cmpi ne, %13, %c0_i32_8 : i32
    scf.if %14 {
      %c0_9 = arith.constant 0 : index
      %c0_10 = arith.constant 0 : index
      %15 = vector.load %arg4[%c0_9, %c0_10] : memref<128x64xf32, #tpu.memory_space<vmem>>, vector<128x64xf32>
      %c0_11 = arith.constant 0 : index
      %c0_12 = arith.constant 0 : index
      %16 = vector.load %arg5[%c0_11, %c0_12] : memref<128x64xbf16, #tpu.memory_space<vmem>>, vector<128x64xbf16>
      %17 = arith.extf %16 : vector<128x64xbf16> to vector<128x64xf32>
      %18 = arith.addf %15, %17 : vector<128x64xf32>
      %c0_13 = arith.constant 0 : index
      %c0_14 = arith.constant 0 : index
      %19 = vector.load %arg7[%c0_13, %c0_14] : memref<128x64xf32, #tpu.memory_space<vmem>>, vector<128x64xf32>
      %20 = arith.addf %18, %19 : vector<128x64xf32>
      %cst_15 = arith.constant 0.333333343 : f32
      %21 = vector.broadcast %cst_15 : f32 to vector<128x64xf32>
      %22 = arith.mulf %20, %21 : vector<128x64xf32>
      %c0_16 = arith.constant 0 : index
      %c0_17 = arith.constant 0 : index
      %23 = vector.load %arg6[%c0_16, %c0_17] : memref<128x64xf32, #tpu.memory_space<vmem>>, vector<128x64xf32>
      tpu.vector_store %arg6[%c0_16, %c0_17], %22 {strides = array<i32>} : memref<128x64xf32, #tpu.memory_space<vmem>>, vector<128x64xf32>,
    } else {
    }
    return
  }
  func.func @transform_0(%arg0: i32, %arg1: i32) -> (i32, i32) {
    %c0_i32 = arith.constant 0 : i32
    return %arg0, %arg1 : i32, i32
  }
  func.func @transform_1(%arg0: i32, %arg1: i32) -> (i32, i32) {
    %c0_i32 = arith.constant 0 : i32
    %c0_i32_0 = arith.constant 0 : i32
    %c0_i32_1 = arith.constant 0 : i32
    return %c0_i32, %c0_i32_0 : i32, i32
  }
  func.func @transform_2(%arg0: i32, %arg1: i32) -> (i32, i32) {
    %c0_i32 = arith.constant 0 : i32
    %c0_i32_0 = arith.constant 0 : i32
    return %arg0, %c0_i32 : i32, i32
  }
  func.func @transform_3(%arg0: i32, %arg1: i32) -> (i32, i32) {
    %c0_i32 = arith.constant 0 : i32
    %c0_i32_0 = arith.constant 0 : i32
    return %arg0, %c0_i32 : i32, i32
  }
  func.func @transform_4(%arg0: i32, %arg1: i32) -> (i32, i32) {
    %c0_i32 = arith.constant 0 : i32
    %c0_i32_0 = arith.constant 0 : i32
    return %arg0, %c0_i32 : i32, i32
  }
}

</mosaic_0001>

<llo_original>
// kernel: lightgcn_propagate.2
$region0: #{lightgcn_propagate.2}
  #allocation0 [shape = 'u32[]', space=smem, size = 0x4, offset = 0x4, fixed_abs, tag = 'smem constant byte address 0x4 - core index']
  #allocation1 [shape = 'u32[144,128]{1,0:T(1,128)}', space=vmem, size = 0x12000, scoped, tag = 'internal scratch']
  #allocation2 [shape = 'f32[128,64]{1,0:T(8,128)}', space=vmem, size = 0x10000, scoped, tag = 'scratch operand']
  %s0 = inlined_call_operand.vmem [shape: bf16[384,384], index: 0, kind: input, shape index: {}]
  %s1 = inlined_call_operand.vmem [shape: bf16[384,64], index: 1, kind: input, shape index: {}]
  %s2 = inlined_call_operand.vmem [shape: bf16[384,64], index: 2, kind: output, shape index: {}]
  %s3 = sld [smem:[#allocation0]]
  $region49: #{lightgcn_propagate.2} parent=0
    _
  %s5 = ssub.s32 1, %s3
  %s6 = scalar_select 0, %s5, %s3
  loop: start=0, step=1, limit=5
  $region2: #{lightgcn_propagate.2} parent=0 // loop_pre_header
    _
  $region3: #{lightgcn_propagate.2} parent=0 // loop_header
    %s8 = sphi 0, %s12
    %p9 = scmp.ge.s32.totalorder %s8, 5
    %s15 = sphi 0, %s27
    %s16 = sphi 0, %s23
    %s17 = sphi 0, %s15
    %s18 = sphi 0, %s16
    %s19 = sphi 0, %s17
    %s20 = sphi 0, %s18
    %s32 = sphi 0, %s34
    %s35 = sphi 0, %s32
    %s36 = sphi 0, %s35
    %s52 = sphi 0, %s36
    %s56 = sphi 0, %s56
    %s58 = sphi 0, %s56
    %s59 = sphi 0, %s58
    %s73 = sphi 0, %s59
    %s79 = sphi 0, %s81
    %s82 = sphi 0, %s79
    %s83 = sphi 0, %s82
    %s99 = sphi 0, %s83
  $region4: #{lightgcn_propagate.2} parent=0 // loop_header_branch
    %11 = sbr.rel (%p9) target = $region8
  $region5: #{lightgcn_propagate.2} parent=0 // loop_body
    %s13 = ssub.s32 %s8, 1
    %s14 = ssub.s32 %s8, 2
    %s21 = sadd.s32 1, %s16
    %p22 = scmp.ge.s32.totalorder %s21, 1
    %s23 = scalar_select %p22, 0, %s21
    %s24 = sadd.s32 1, %s15
    %s25 = scalar_select %p22, %s24, %s15
    %p26 = scmp.ge.s32.totalorder %s25, 3
    %s27 = scalar_select %p26, 0, %s25
    %s28 = ssub.s32 %s15, %s27
    %s29 = ssub.s32 %s16, %s23
    %s30 = sor.u32 %s28, %s29
    %p31 = scmp.eq.s32.totalorder %s30, 0
    %s33 = sadd.s32 %s32, 1
    %s34 = scalar_select %p31, %s32, %s33
    %p37 = pneg %p31
    %p38 = scmp.eq.s32.totalorder %s8, 2
    %p39 = por %p37, %p38
    %p40 = scmp.ne.s32.totalorder %s32, %s35
    %p41 = scmp.eq.s32.totalorder %s8, 0
    %p42 = por %p40, %p41
    %p43 = scmp.ne.s32.totalorder %s32, %s35
    %p44 = scmp.eq.s32.totalorder %s13, 2
    %p45 = por %p43, %p44
    %p46 = scmp.ne.s32.totalorder %s35, %s36
    %p47 = scmp.eq.s32.totalorder %s13, 0
    %p48 = por %p46, %p47
    %p49 = scmp.ne.s32.totalorder %s35, %s36
    %p50 = scmp.eq.s32.totalorder %s14, 2
    %p51 = por %p49, %p50
    %p53 = scmp.ne.s32.totalorder %s36, %s52
    %p54 = scmp.eq.s32.totalorder %s14, 0
    %p55 = por %p53, %p54
    %s57 = sadd.s32 %s56, 1
    %p60 = scmp.eq.s32.totalorder %s8, 2
    %p61 = scmp.ne.s32.totalorder %s56, %s58
    %p62 = scmp.eq.s32.totalorder %s8, 0
    %p63 = por %p61, %p62
    %p64 = scmp.ne.s32.totalorder %s56, %s58
    %p65 = scmp.eq.s32.totalorder %s13, 2
    %p66 = por %p64, %p65
    %p67 = scmp.ne.s32.totalorder %s58, %s59
    %p68 = scmp.eq.s32.totalorder %s13, 0
    %p69 = por %p67, %p68
    %p70 = scmp.ne.s32.totalorder %s58, %s59
    %p71 = scmp.eq.s32.totalorder %s14, 2
    %p72 = por %p70, %p71
    %p74 = scmp.ne.s32.totalorder %s59, %s73
    %p75 = scmp.eq.s32.totalorder %s14, 0
    %p76 = por %p74, %p75
    %s77 = ssub.s32 %s15, %s27
    %p78 = scmp.eq.s32.totalorder %s77, 0
    %s80 = sadd.s32 %s79, 1
    %s81 = scalar_select %p78, %s79, %s80
    %p84 = pneg %p78
    %p85 = scmp.eq.s32.totalorder %s8, 2
    %p86 = por %p84, %p85
    %p87 = scmp.ne.s32.totalorder %s79, %s82
    %p88 = scmp.eq.s32.totalorder %s8, 0
    %p89 = por %p87, %p88
    %p90 = scmp.ne.s32.totalorder %s79, %s82
    %p91 = scmp.eq.s32.totalorder %s13, 2
    %p92 = por %p90, %p91
    %p93 = scmp.ne.s32.totalorder %s82, %s83
    %p94 = scmp.eq.s32.totalorder %s13, 0
    %p95 = por %p93, %p94
    %p96 = scmp.ne.s32.totalorder %s82, %s83
    %p97 = scmp.eq.s32.totalorder %s14, 2
    %p98 = por %p96, %p97
    %p100 = scmp.ne.s32.totalorder %s83, %s99
    %p101 = scmp.eq.s32.totalorder %s14, 0
    %p102 = por %p100, %p101
    %p103 = scmp.le.s32.totalorder 1, %s8
    %p104 = scmp.lt.s32.totalorder %s8, 4
    %p105 = pnand %p103, %p104
    %p106 = pneg %p105
    // Predicated region
    $region9: #{lightgcn_propagate.2} parent=5 // pred_check
      _
    $region10: #{lightgcn_propagate.2} parent=5 // pred_check_branch
      %108 = sbr.rel (%p105) target = $region12
    $region11: #{lightgcn_propagate.2} parent=5 // pred_region
      %s109 = ssub.s32 %s8, 1
      // Predicated region
      $region13: #{lightgcn_propagate.2} parent=11 // pred_check
        %p110 = pneg %p69
      $region14: #{lightgcn_propagate.2} parent=11 // pred_check_branch
        %112 = sbr.rel (%p110) target = $region16
      $region15: #{lightgcn_propagate.2} parent=11 // pred_region
        _
      $region16: #{lightgcn_propagate.2} parent=11 // pred_fallthru
        _
    $region12: #{lightgcn_propagate.2} parent=5 // pred_fallthru
      _
    %p113 = scmp.lt.s32.totalorder %s8, 3
    // Predicated region
    $region17: #{lightgcn_propagate.2} parent=5 // pred_check
      %p114 = pneg %p113
    $region18: #{lightgcn_propagate.2} parent=5 // pred_check_branch
      %116 = sbr.rel (%p114) target = $region20
    $region19: #{lightgcn_propagate.2} parent=5 // pred_region
      // Predicated region
      $region21: #{lightgcn_propagate.2} parent=19 // pred_check
        %p117 = pneg %p42
      $region22: #{lightgcn_propagate.2} parent=19 // pred_check_branch
        %119 = sbr.rel (%p117) target = $region24
      $region23: #{lightgcn_propagate.2} parent=19 // pred_region
        %s120 = smul.u32 16, %s15
        %s121 = smul.u32 3, %s16
        %p122 = scmp.lt.s32.totalorder %s120, 47
        %s123 = scalar_select %p122, %s120, 47
        %p124 = scmp.lt.s32.totalorder %s121, 2
        %s125 = scalar_select %p124, %s121, 2
        %s126 = smul.addr %s123, 3
        %s127 = sadd.s32 %s125, %s126
        %s128 = smul.addr %s127, 4
        %s129 = scalar_lea.vmem %s0, %s128
        %s130 = smul.u32 16, %s15
        %s131 = smul.u32 3, %s16
      $region24: #{lightgcn_propagate.2} parent=19 // pred_fallthru
        _
    $region20: #{lightgcn_propagate.2} parent=5 // pred_fallthru
      _
    %p132 = scmp.le.s32.totalorder 1, %s8
    %p133 = scmp.lt.s32.totalorder %s8, 4
    %p134 = pnand %p132, %p133
    %p135 = pneg %p134
    // Predicated region
    $region25: #{lightgcn_propagate.2} parent=5 // pred_check
      _
    $region26: #{lightgcn_propagate.2} parent=5 // pred_check_branch
      %137 = sbr.rel (%p134) target = $region28
    $region27: #{lightgcn_propagate.2} parent=5 // pred_region
      %s138 = ssub.s32 %s8, 1
      %s139 = smul.u32 16, %s17
      %s140 = smul.u32 3, %s18
      %p141 = scmp.lt.s32.totalorder %s139, 47
      %s142 = scalar_select %p141, %s139, 47
      %p143 = scmp.lt.s32.totalorder %s140, 2
      %s144 = scalar_select %p143, %s140, 2
      %s145 = smul.addr %s142, 3
      %s146 = sadd.s32 %s144, %s145
      %s147 = smul.addr %s146, 4
      %s148 = scalar_lea.vmem %s0, %s147
      %p149 = pneg %p48
      %p150 = pneg %p45
      %p151 = pneg %p69
      %p152 = pneg %p66
      %p153 = pneg %p95
      %p154 = pneg %p92
      %s155 = smul.u32 16, %s17
      %p156 = scmp.lt.s32.totalorder %s155, 47
      %s157 = scalar_select %p156, %s155, 47
      %s158 = smul.addr %s157, 4
      %s159 = scalar_lea.vmem %s2, %s158
      %s160 = smul.u32 16, %s17
      %s161 = smul.u32 3, %s18
      %p162 = scmp.lt.s32.totalorder %s160, 47
      %s163 = scalar_select %p162, %s160, 47
      %p164 = scmp.lt.s32.totalorder %s161, 2
      %s165 = scalar_select %p164, %s161, 2
      %s166 = smul.addr %s163, 3
      %s167 = sadd.s32 %s165, %s166
      %s168 = smul.addr %s167, 4
      %s169 = scalar_lea.vmem %s0, %s168
      %s170 = smul.u32 16, %s17
      %s171 = smul.u32 3, %s18
      %s172 = smul.u32 16, %s17
      %p173 = scmp.lt.s32.totalorder %s172, 47
      %s174 = scalar_select %p173, %s172, 47
      %s175 = smul.addr %s174, 4
      %s176 = scalar_lea.vmem %s2, %s175
      %s177 = smul.u32 16, %s17
      %p179 = scmp.eq.s32.totalorder %s18, 0
      // Predicated region
      $region29: #{lightgcn_propagate.2} parent=27 // pred_check
        %p180 = pneg %p179
      $region30: #{lightgcn_propagate.2} parent=27 // pred_check_branch
        %182 = sbr.rel (%p180) target = $region32
      $region31: #{lightgcn_propagate.2} parent=27 // pred_region
        %vm183 = vcmask 523264
        %184 = vst.msk [vmem:[#allocation2] sm:$0xff] %vm183, 0.0
        %185 = vst.msk [vmem:[#allocation2 + $0x8] sm:$0xff] %vm183, 0.0
        %186 = vst.msk [vmem:[#allocation2 + $0x10] sm:$0xff] %vm183, 0.0
        %187 = vst.msk [vmem:[#allocation2 + $0x18] sm:$0xff] %vm183, 0.0
        %188 = vst.msk [vmem:[#allocation2 + $0x20] sm:$0xff] %vm183, 0.0
        %189 = vst.msk [vmem:[#allocation2 + $0x28] sm:$0xff] %vm183, 0.0
        %190 = vst.msk [vmem:[#allocation2 + $0x30] sm:$0xff] %vm183, 0.0
        %191 = vst.msk [vmem:[#allocation2 + $0x38] sm:$0xff] %vm183, 0.0
        %192 = vst.msk [vmem:[#allocation2 + $0x40] sm:$0xff] %vm183, 0.0
        %193 = vst.msk [vmem:[#allocation2 + $0x48] sm:$0xff] %vm183, 0.0
        %194 = vst.msk [vmem:[#allocation2 + $0x50] sm:$0xff] %vm183, 0.0
        %195 = vst.msk [vmem:[#allocation2 + $0x58] sm:$0xff] %vm183, 0.0
        %196 = vst.msk [vmem:[#allocation2 + $0x60] sm:$0xff] %vm183, 0.0
        %197 = vst.msk [vmem:[#allocation2 + $0x68] sm:$0xff] %vm183, 0.0
        %198 = vst.msk [vmem:[#allocation2 + $0x70] sm:$0xff] %vm183, 0.0
        %199 = vst.msk [vmem:[#allocation2 + $0x78] sm:$0xff] %vm183, 0.0
      $region32: #{lightgcn_propagate.2} parent=27 // pred_fallthru
        _
      %s200 = smul.u32 %s18, 384
      %v201 = vld [vmem:[#allocation2] sm:$0xff]
      %v202 = vld [vmem:[#allocation2 + $0x8] sm:$0xff]
      %v203 = vld [vmem:[#allocation2 + $0x10] sm:$0xff]
      %v204 = vld [vmem:[#allocation2 + $0x18] sm:$0xff]
      %v205 = vld [vmem:[#allocation2 + $0x20] sm:$0xff]
      %v206 = vld [vmem:[#allocation2 + $0x28] sm:$0xff]
      %v207 = vld [vmem:[#allocation2 + $0x30] sm:$0xff]
      %v208 = vld [vmem:[#allocation2 + $0x38] sm:$0xff]
      %v209 = vld [vmem:[#allocation2 + $0x40] sm:$0xff]
      %v210 = vld [vmem:[#allocation2 + $0x48] sm:$0xff]
      %v211 = vld [vmem:[#allocation2 + $0x50] sm:$0xff]
      %v212 = vld [vmem:[#allocation2 + $0x58] sm:$0xff]
      %v213 = vld [vmem:[#allocation2 + $0x60] sm:$0xff]
      %v214 = vld [vmem:[#allocation2 + $0x68] sm:$0xff]
      %v215 = vld [vmem:[#allocation2 + $0x70] sm:$0xff]
      %v216 = vld [vmem:[#allocation2 + $0x78] sm:$0xff]
      %v217 = vld [vmem:[%s169] sm:$0xff]
      %v218 = vld [vmem:[%s169 + $0x8] sm:$0xf]
      %v219 = vld [vmem:[%s169 + $0xc] sm:$0xff]
      %v220 = vld [vmem:[%s169 + $0x14] sm:$0xf]
      %v221 = vld [vmem:[%s169 + $0x18] sm:$0xff]
      %v222 = vld [vmem:[%s169 + $0x20] sm:$0xf]
      %v223 = vld [vmem:[%s169 + $0x24] sm:$0xff]
      %v224 = vld [vmem:[%s169 + $0x2c] sm:$0xf]
      %v225 = vld [vmem:[%s169 + $0x30] sm:$0xff]
      %v226 = vld [vmem:[%s169 + $0x38] sm:$0xf]
      %v227 = vld [vmem:[%s169 + $0x3c] sm:$0xff]
      %v228 = vld [vmem:[%s169 + $0x44] sm:$0xf]
      %v229 = vld [vmem:[%s169 + $0x48] sm:$0xff]
      %v230 = vld [vmem:[%s169 + $0x50] sm:$0xf]
      %v231 = vld [vmem:[%s169 + $0x54] sm:$0xff]
      %v232 = vld [vmem:[%s169 + $0x5c] sm:$0xf]
      %v233 = vld [vmem:[%s169 + $0x60] sm:$0xff]
      %v234 = vld [vmem:[%s169 + $0x68] sm:$0xf]
      %v235 = vld [vmem:[%s169 + $0x6c] sm:$0xff]
      %v236 = vld [vmem:[%s169 + $0x74] sm:$0xf]
      %v237 = vld [vmem:[%s169 + $0x78] sm:$0xff]
      %v238 = vld [vmem:[%s169 + $0x80] sm:$0xf]
      %v239 = vld [vmem:[%s169 + $0x84] sm:$0xff]
      %v240 = vld [vmem:[%s169 + $0x8c] sm:$0xf]
      %v241 = vld [vmem:[%s169 + $0x90] sm:$0xff]
      %v242 = vld [vmem:[%s169 + $0x98] sm:$0xf]
      %v243 = vld [vmem:[%s169 + $0x9c] sm:$0xff]
      %v244 = vld [vmem:[%s169 + $0xa4] sm:$0xf]
      %v245 = vld [vmem:[%s169 + $0xa8] sm:$0xff]
      %v246 = vld [vmem:[%s169 + $0xb0] sm:$0xf]
      %v247 = vld [vmem:[%s169 + $0xb4] sm:$0xff]
      %v248 = vld [vmem:[%s169 + $0xbc] sm:$0xf]
      %s249 = sshra.s32 %s200, 3
      %s250 = sand.u32 %s200, 7
      %s251 = smul.addr %s249, 4
      %s252 = scalar_lea.vmem %s1, %s251
      %v253 = vld [vmem:[%s252] sm:$0xf]
      %v254 = vld [vmem:[%s252 + $0x4] sm:$0xf]
      %v255 = vld [vmem:[%s252 + $0x8] sm:$0xf]
      %v256 = vld [vmem:[%s252 + $0xc] sm:$0xf]
      %v257 = vld [vmem:[%s252 + $0x10] sm:$0xf]
      %v258 = vld [vmem:[%s252 + $0x14] sm:$0xf]
      %v259 = vld [vmem:[%s252 + $0x18] sm:$0xf]
      %v260 = vld [vmem:[%s252 + $0x1c] sm:$0xf]
      %v261 = vld [vmem:[%s252 + $0x20] sm:$0xf]
      %v262 = vld [vmem:[%s252 + $0x24] sm:$0xf]
      %v263 = vld [vmem:[%s252 + $0x28] sm:$0xf]
      %v264 = vld [vmem:[%s252 + $0x2c] sm:$0xf]
      %v265 = vld [vmem:[%s252 + $0x30] sm:$0xf]
      %v266 = vld [vmem:[%s252 + $0x34] sm:$0xf]
      %v267 = vld [vmem:[%s252 + $0x38] sm:$0xf]
      %v268 = vld [vmem:[%s252 + $0x3c] sm:$0xf]
      %v269 = vld [vmem:[%s252 + $0x40] sm:$0xf]
      %v270 = vld [vmem:[%s252 + $0x44] sm:$0xf]
      %v271 = vld [vmem:[%s252 + $0x48] sm:$0xf]
      %v272 = vld [vmem:[%s252 + $0x4c] sm:$0xf]
      %v273 = vld [vmem:[%s252 + $0x50] sm:$0xf]
      %v274 = vld [vmem:[%s252 + $0x54] sm:$0xf]
      %v275 = vld [vmem:[%s252 + $0x58] sm:$0xf]
      %v276 = vld [vmem:[%s252 + $0x5c] sm:$0xf]
      %v277 = vld [vmem:[%s252 + $0x60] sm:$0xf]
      %v278 = vld [vmem:[%s252 + $0x64] sm:$0xf]
      %v279 = vld [vmem:[%s252 + $0x68] sm:$0xf]
      %v280 = vld [vmem:[%s252 + $0x6c] sm:$0xf]
      %v281 = vld [vmem:[%s252 + $0x70] sm:$0xf]
      %v282 = vld [vmem:[%s252 + $0x74] sm:$0xf]
      %v283 = vld [vmem:[%s252 + $0x78] sm:$0xf]
      %v284 = vld [vmem:[%s252 + $0x7c] sm:$0xf]
      %v285 = vld [vmem:[%s252 + $0x80] sm:$0xf]
      %v286 = vld [vmem:[%s252 + $0x84] sm:$0xf]
      %v287 = vld [vmem:[%s252 + $0x88] sm:$0xf]
      %v288 = vld [vmem:[%s252 + $0x8c] sm:$0xf]
      %v289 = vld [vmem:[%s252 + $0x90] sm:$0xf]
      %v290 = vld [vmem:[%s252 + $0x94] sm:$0xf]
      %v291 = vld [vmem:[%s252 + $0x98] sm:$0xf]
      %v292 = vld [vmem:[%s252 + $0x9c] sm:$0xf]
      %v293 = vld [vmem:[%s252 + $0xa0] sm:$0xf]
      %v294 = vld [vmem:[%s252 + $0xa4] sm:$0xf]
      %v295 = vld [vmem:[%s252 + $0xa8] sm:$0xf]
      %v296 = vld [vmem:[%s252 + $0xac] sm:$0xf]
      %v297 = vld [vmem:[%s252 + $0xb0] sm:$0xf]
      %v298 = vld [vmem:[%s252 + $0xb4] sm:$0xf]
      %v299 = vld [vmem:[%s252 + $0xb8] sm:$0xf]
      %v300 = vld [vmem:[%s252 + $0xbc] sm:$0xf]
      %v333 = vunpack.c.l.b16 %v217
      %v334 = vunpack.c.h.b16 %v217
      %v335 = vunpack.c.l.b16 %v218
      %v336 = vunpack.c.l.b16 %v219
      %v337 = vunpack.c.h.b16 %v219
      %v338 = vunpack.c.l.b16 %v220
      %v339 = vunpack.c.l.b16 %v221
      %v340 = vunpack.c.h.b16 %v221
      %v341 = vunpack.c.l.b16 %v222
      %v342 = vunpack.c.l.b16 %v223
      %v343 = vunpack.c.h.b16 %v223
      %v344 = vunpack.c.l.b16 %v224
      %v345 = vunpack.c.l.b16 %v225
      %v346 = vunpack.c.h.b16 %v225
      %v347 = vunpack.c.l.b16 %v226
      %v348 = vunpack.c.l.b16 %v227
      %v349 = vunpack.c.h.b16 %v227
      %v350 = vunpack.c.l.b16 %v228
      %v351 = vunpack.c.l.b16 %v229
      %v352 = vunpack.c.h.b16 %v229
      %v353 = vunpack.c.l.b16 %v230
      %v354 = vunpack.c.l.b16 %v231
      %v355 = vunpack.c.h.b16 %v231
      %v356 = vunpack.c.l.b16 %v232
      %v357 = vunpack.c.l.b16 %v233
      %v358 = vunpack.c.h.b16 %v233
      %v359 = vunpack.c.l.b16 %v234
      %v360 = vunpack.c.l.b16 %v235
      %v361 = vunpack.c.h.b16 %v235
      %v362 = vunpack.c.l.b16 %v236
      %v363 = vunpack.c.l.b16 %v237
      %v364 = vunpack.c.h.b16 %v237
      %v365 = vunpack.c.l.b16 %v238
      %v366 = vunpack.c.l.b16 %v239
      %v367 = vunpack.c.h.b16 %v239
      %v368 = vunpack.c.l.b16 %v240
      %v369 = vunpack.c.l.b16 %v241
      %v370 = vunpack.c.h.b16 %v241
      %v371 = vunpack.c.l.b16 %v242
      %v372 = vunpack.c.l.b16 %v243
      %v373 = vunpack.c.h.b16 %v243
      %v374 = vunpack.c.l.b16 %v244
      %v375 = vunpack.c.l.b16 %v245
      %v376 = vunpack.c.h.b16 %v245
      %v377 = vunpack.c.l.b16 %v246
      %v378 = vunpack.c.l.b16 %v247
      %v379 = vunpack.c.h.b16 %v247
      %v380 = vunpack.c.l.b16 %v248
      %v381 = vpack.c.b16 %v336, %v333
      %v382 = vpack.c.b16 %v337, %v334
      %v383 = vpack.c.b16 %v338, %v335
      %v384 = vpack.c.b16 %v342, %v339
      %v385 = vpack.c.b16 %v343, %v340
      %v386 = vpack.c.b16 %v344, %v341
      %v387 = vpack.c.b16 %v348, %v345
      %v388 = vpack.c.b16 %v349, %v346
      %v389 = vpack.c.b16 %v350, %v347
      %v390 = vpack.c.b16 %v354, %v351
      %v391 = vpack.c.b16 %v355, %v352
      %v392 = vpack.c.b16 %v356, %v353
      %v393 = vpack.c.b16 %v360, %v357
      %v394 = vpack.c.b16 %v361, %v358
      %v395 = vpack.c.b16 %v362, %v359
      %v396 = vpack.c.b16 %v366, %v363
      %v397 = vpack.c.b16 %v367, %v364
      %v398 = vpack.c.b16 %v368, %v365
      %v399 = vpack.c.b16 %v372, %v369
      %v400 = vpack.c.b16 %v373, %v370
      %v401 = vpack.c.b16 %v374, %v371
      %v402 = vpack.c.b16 %v378, %v375
      %v403 = vpack.c.b16 %v379, %v376
      %v404 = vpack.c.b16 %v380, %v377
      %v477 = vunpack.c.l.b16 %v253
      %v478 = vunpack.c.l.b16 %v254
      %v479 = vunpack.c.l.b16 %v255
      %v480 = vunpack.c.l.b16 %v256
      %v481 = vunpack.c.l.b16 %v257
      %v482 = vunpack.c.l.b16 %v258
      %v483 = vunpack.c.l.b16 %v259
      %v484 = vunpack.c.l.b16 %v260
      %v485 = vunpack.c.l.b16 %v261
      %v486 = vunpack.c.l.b16 %v262
      %v487 = vunpack.c.l.b16 %v263
      %v488 = vunpack.c.l.b16 %v264
      %v489 = vunpack.c.l.b16 %v265
      %v490 = vunpack.c.l.b16 %v266
      %v491 = vunpack.c.l.b16 %v267
      %v492 = vunpack.c.l.b16 %v268
      %v493 = vunpack.c.l.b16 %v269
      %v494 = vunpack.c.l.b16 %v270
      %v495 = vunpack.c.l.b16 %v271
      %v496 = vunpack.c.l.b16 %v272
      %v497 = vunpack.c.l.b16 %v273
      %v498 = vunpack.c.l.b16 %v274
      %v499 = vunpack.c.l.b16 %v275
      %v500 = vunpack.c.l.b16 %v276
      %v501 = vunpack.c.l.b16 %v277
      %v502 = vunpack.c.l.b16 %v278
      %v503 = vunpack.c.l.b16 %v279
      %v504 = vunpack.c.l.b16 %v280
      %v505 = vunpack.c.l.b16 %v281
      %v506 = vunpack.c.l.b16 %v282
      %v507 = vunpack.c.l.b16 %v283
      %v508 = vunpack.c.l.b16 %v284
      %v509 = vunpack.c.l.b16 %v285
      %v510 = vunpack.c.l.b16 %v286
      %v511 = vunpack.c.l.b16 %v287
      %v512 = vunpack.c.l.b16 %v288
      %v513 = vunpack.c.l.b16 %v289
      %v514 = vunpack.c.l.b16 %v290
      %v515 = vunpack.c.l.b16 %v291
      %v516 = vunpack.c.l.b16 %v292
      %v517 = vunpack.c.l.b16 %v293
      %v518 = vunpack.c.l.b16 %v294
      %v519 = vunpack.c.l.b16 %v295
      %v520 = vunpack.c.l.b16 %v296
      %v521 = vunpack.c.l.b16 %v297
      %v522 = vunpack.c.l.b16 %v298
      %v523 = vunpack.c.l.b16 %v299
      %v524 = vunpack.c.l.b16 %v300
      %v525 = vpack.c.b16 %v478, %v477
      %v526 = vpack.c.b16 %v480, %v479
      %v527 = vpack.c.b16 %v482, %v481
      %v528 = vpack.c.b16 %v484, %v483
      %v529 = vpack.c.b16 %v486, %v485
      %v530 = vpack.c.b16 %v488, %v487
      %v531 = vpack.c.b16 %v490, %v489
      %v532 = vpack.c.b16 %v492, %v491
      %v533 = vpack.c.b16 %v494, %v493
      %v534 = vpack.c.b16 %v496, %v495
      %v535 = vpack.c.b16 %v498, %v497
      %v536 = vpack.c.b16 %v500, %v499
      %v537 = vpack.c.b16 %v502, %v501
      %v538 = vpack.c.b16 %v504, %v503
      %v539 = vpack.c.b16 %v506, %v505
      %v540 = vpack.c.b16 %v508, %v507
      %v541 = vpack.c.b16 %v510, %v509
      %v542 = vpack.c.b16 %v512, %v511
      %v543 = vpack.c.b16 %v514, %v513
      %v544 = vpack.c.b16 %v516, %v515
      %v545 = vpack.c.b16 %v518, %v517
      %v546 = vpack.c.b16 %v520, %v519
      %v547 = vpack.c.b16 %v522, %v521
      %v548 = vpack.c.b16 %v524, %v523
      %573 = vmatprep.subr.bf16.mxu0 0
      %574 = vmatpush1.bf16.msra.mxu0 %v525
      %575 = vmatprep.subr.bf16.mxu0 0
      %576 = vmatpush1.bf16.msra.mxu0 %v526
      %577 = vmatprep.subr.bf16.mxu0 0
      %578 = vmatpush1.bf16.msra.mxu0 %v527
      %579 = vmatprep.subr.bf16.mxu0 0
      %580 = vmatpush1.bf16.msra.mxu0 %v528
      %581 = vmatprep.subr.bf16.mxu0 0
      %582 = vmatpush1.bf16.msra.mxu0 %v529
      %583 = vmatprep.subr.bf16.mxu0 0
      %584 = vmatpush1.bf16.msra.mxu0 %v530
      %585 = vmatprep.subr.bf16.mxu0 0
      %586 = vmatpush1.bf16.msra.mxu0 %v531
      %587 = vmatprep.subr.bf16.mxu0 0
      %588 = vmatpush1.bf16.msra.mxu0 %v532
      %589 = vmatprep.subr.bf16.mxu0 0
      %590 = vmatpush1.bf16.msra.mxu0 %v533
      %591 = vmatprep.subr.bf16.mxu0 0
      %592 = vmatpush1.bf16.msra.mxu0 %v534
      %593 = vmatprep.subr.bf16.mxu0 0
      %594 = vmatpush1.bf16.msra.mxu0 %v535
      %595 = vmatprep.subr.bf16.mxu0 0
      %596 = vmatpush1.bf16.msra.mxu0 %v536
      %597 = vmatprep.subr.bf16.mxu0 0
      %598 = vmatpush1.bf16.msra.mxu0 %v537
      %599 = vmatprep.subr.bf16.mxu0 0
      %600 = vmatpush1.bf16.msra.mxu0 %v538
      %601 = vmatprep.subr.bf16.mxu0 0
      %602 = vmatpush1.bf16.msra.mxu0 %v539
      %603 = vmatprep.subr.bf16.mxu0 0
      %604 = vmatpush1.bf16.msra.mxu0 %v540
      %605 = vmatprep.mubr.bf16.mxu0 %v382
      %606 = vmatmul.mubr.bf16.gmra.mrb[0].mxu0 %v381
      %v607 = vpop.f32.mrb[0].mxu0
      %v608 = vadd.f32 0.0, %v607
      %v609 = vpop.f32.mrb[0].mxu0
      %v610 = vpop.f32.mrb[0].mxu0
      %v611 = vadd.f32 0.0, %v610
      %v612 = vpop.f32.mrb[0].mxu0
      %613 = vmatprep.mubr.bf16.mxu0 %v385
      %614 = vmatmul.mubr.bf16.gmra.mrb[0].mxu0 %v384
      %v615 = vpop.f32.mrb[0].mxu0
      %v616 = vadd.f32 0.0, %v615
      %v617 = vpop.f32.mrb[0].mxu0
      %v618 = vpop.f32.mrb[0].mxu0
      %v619 = vadd.f32 0.0, %v618
      %v620 = vpop.f32.mrb[0].mxu0
      %621 = vmatprep.mubr.bf16.mxu0 %v388
      %622 = vmatmul.mubr.bf16.gmra.mrb[0].mxu0 %v387
      %v623 = vpop.f32.mrb[0].mxu0
      %v624 = vadd.f32 0.0, %v623
      %v625 = vpop.f32.mrb[0].mxu0
      %v626 = vpop.f32.mrb[0].mxu0
      %v627 = vadd.f32 0.0, %v626
      %v628 = vpop.f32.mrb[0].mxu0
      %629 = vmatprep.mubr.bf16.mxu0 %v391
      %630 = vmatmul.mubr.bf16.gmra.mrb[0].mxu0 %v390
      %v631 = vpop.f32.mrb[0].mxu0
      %v632 = vadd.f32 0.0, %v631
      %v633 = vpop.f32.mrb[0].mxu0
      %v634 = vpop.f32.mrb[0].mxu0
      %v635 = vadd.f32 0.0, %v634
      %v636 = vpop.f32.mrb[0].mxu0
      %637 = vmatprep.mubr.bf16.mxu0 %v394
      %638 = vmatmul.mubr.bf16.gmra.mrb[0].mxu0 %v393
      %v639 = vpop.f32.mrb[0].mxu0
      %v640 = vadd.f32 0.0, %v639
      %v641 = vpop.f32.mrb[0].mxu0
      %v642 = vpop.f32.mrb[0].mxu0
      %v643 = vadd.f32 0.0, %v642
      %v644 = vpop.f32.mrb[0].mxu0
      %645 = vmatprep.mubr.bf16.mxu0 %v397
      %646 = vmatmul.mubr.bf16.gmra.mrb[0].mxu0 %v396
      %v647 = vpop.f32.mrb[0].mxu0
      %v648 = vadd.f32 0.0, %v647
      %v649 = vpop.f32.mrb[0].mxu0
      %v650 = vpop.f32.mrb[0].mxu0
      %v651 = vadd.f32 0.0, %v650
      %v652 = vpop.f32.mrb[0].mxu0
      %653 = vmatprep.mubr.bf16.mxu0 %v400
      %654 = vmatmul.mubr.bf16.gmra.mrb[0].mxu0 %v399
      %v655 = vpop.f32.mrb[0].mxu0
      %v656 = vadd.f32 0.0, %v655
      %v657 = vpop.f32.mrb[0].mxu0
      %v658 = vpop.f32.mrb[0].mxu0
      %v659 = vadd.f32 0.0, %v658
      %v660 = vpop.f32.mrb[0].mxu0
      %661 = vmatprep.mubr.bf16.mxu0 %v403
      %662 = vmatmul.mubr.bf16.gmra.mrb[0].mxu0 %v402
      %v663 = vpop.f32.mrb[0].mxu0
      %v664 = vadd.f32 0.0, %v663
      %v665 = vpop.f32.mrb[0].mxu0
      %v666 = vpop.f32.mrb[0].mxu0
      %v667 = vadd.f32 0.0, %v666
      %v668 = vpop.f32.mrb[0].mxu0
      %669 = vdwg.mxu0
      %670 = vmatprep.subr.bf16.mxu0 0
      %671 = vmatpush1.bf16.msra.mxu0 %v541
      %672 = vmatprep.subr.bf16.mxu0 0
      %673 = vmatpush1.bf16.msra.mxu0 %v542
      %674 = vmatprep.subr.bf16.mxu0 0
      %675 = vmatpush1.bf16.msra.mxu0 %v543
      %676 = vmatprep.subr.bf16.mxu0 0
      %677 = vmatpush1.bf16.msra.mxu0 %v544
      %678 = vmatprep.subr.bf16.mxu0 0
      %679 = vmatpush1.bf16.msra.mxu0 %v545
      %680 = vmatprep.subr.bf16.mxu0 0
      %681 = vmatpush1.bf16.msra.mxu0 %v546
      %682 = vmatprep.subr.bf16.mxu0 0
      %683 = vmatpush1.bf16.msra.mxu0 %v547
      %684 = vmatprep.subr.bf16.mxu0 0
      %685 = vmatpush1.bf16.msra.mxu0 %v548
      %686 = vmatprep.subr.bf16.mxu0 0
      %687 = vmatpush1.bf16.msra.mxu0 0
      %688 = vmatprep.subr.bf16.mxu0 0
      %689 = vmatpush1.bf16.msra.mxu0 0
      %690 = vmatprep.subr.bf16.mxu0 0
      %691 = vmatpush1.bf16.msra.mxu0 0
      %692 = vmatprep.subr.bf16.mxu0 0
      %693 = vmatpush1.bf16.msra.mxu0 0
      %694 = vmatprep.subr.bf16.mxu0 0
      %695 = vmatpush1.bf16.msra.mxu0 0
      %696 = vmatprep.subr.bf16.mxu0 0
      %697 = vmatpush1.bf16.msra.mxu0 0
      %698 = vmatprep.subr.bf16.mxu0 0
      %699 = vmatpush1.bf16.msra.mxu0 0
      %700 = vmatprep.subr.bf16.mxu0 0
      %701 = vmatpush1.bf16.msra.mxu0 0
      %702 = vmatprep.mubr.bf16.mxu0 0
      %703 = vmatmul.mubr.bf16.gmra.mrb[0].mxu0 %v383
      %v704 = vpop.f32.mrb[0].mxu0
      %v705 = vadd.f32 %v608, %v704
      %v706 = vpop.f32.mrb[0].mxu0
      %v707 = vpop.f32.mrb[0].mxu0
      %v708 = vadd.f32 %v611, %v707
      %v709 = vpop.f32.mrb[0].mxu0
      %710 = vmatprep.mubr.bf16.mxu0 0
      %711 = vmatmul.mubr.bf16.gmra.mrb[0].mxu0 %v386
      %v712 = vpop.f32.mrb[0].mxu0
      %v713 = vadd.f32 %v616, %v712
      %v714 = vpop.f32.mrb[0].mxu0
      %v715 = vpop.f32.mrb[0].mxu0
      %v716 = vadd.f32 %v619, %v715
      %v717 = vpop.f32.mrb[0].mxu0
      %718 = vmatprep.mubr.bf16.mxu0 0
      %719 = vmatmul.mubr.bf16.gmra.mrb[0].mxu0 %v389
      %v720 = vpop.f32.mrb[0].mxu0
      %v721 = vadd.f32 %v624, %v720
      %v722 = vpop.f32.mrb[0].mxu0
      %v723 = vpop.f32.mrb[0].mxu0
      %v724 = vadd.f32 %v627, %v723
      %v725 = vpop.f32.mrb[0].mxu0
      %726 = vmatprep.mubr.bf16.mxu0 0
      %727 = vmatmul.mubr.bf16.gmra.mrb[0].mxu0 %v392
      %v728 = vpop.f32.mrb[0].mxu0
      %v729 = vadd.f32 %v632, %v728
      %v730 = vpop.f32.mrb[0].mxu0
      %v731 = vpop.f32.mrb[0].mxu0
      %v732 = vadd.f32 %v635, %v731
      %v733 = vpop.f32.mrb[0].mxu0
      %734 = vmatprep.mubr.bf16.mxu0 0
      %735 = vmatmul.mubr.bf16.gmra.mrb[0].mxu0 %v395
      %v736 = vpop.f32.mrb[0].mxu0
      %v737 = vadd.f32 %v640, %v736
      %v738 = vpop.f32.mrb[0].mxu0
      %v739 = vpop.f32.mrb[0].mxu0
      %v740 = vadd.f32 %v643, %v739
      %v741 = vpop.f32.mrb[0].mxu0
      %742 = vmatprep.mubr.bf16.mxu0 0
      %743 = vmatmul.mubr.bf16.gmra.mrb[0].mxu0 %v398
      %v744 = vpop.f32.mrb[0].mxu0
      %v745 = vadd.f32 %v648, %v744
      %v746 = vpop.f32.mrb[0].mxu0
      %v747 = vpop.f32.mrb[0].mxu0
      %v748 = vadd.f32 %v651, %v747
      %v749 = vpop.f32.mrb[0].mxu0
      %750 = vmatprep.mubr.bf16.mxu0 0
      %751 = vmatmul.mubr.bf16.gmra.mrb[0].mxu0 %v401
      %v752 = vpop.f32.mrb[0].mxu0
      %v753 = vadd.f32 %v656, %v752
      %v754 = vpop.f32.mrb[0].mxu0
      %v755 = vpop.f32.mrb[0].mxu0
      %v756 = vadd.f32 %v659, %v755
      %v757 = vpop.f32.mrb[0].mxu0
      %758 = vmatprep.mubr.bf16.mxu0 0
      %759 = vmatmul.mubr.bf16.gmra.mrb[0].mxu0 %v404
      %v760 = vpop.f32.mrb[0].mxu0
      %v761 = vadd.f32 %v664, %v760
      %v762 = vpop.f32.mrb[0].mxu0
      %v763 = vpop.f32.mrb[0].mxu0
      %v764 = vadd.f32 %v667, %v763
      %v765 = vpop.f32.mrb[0].mxu0
      %766 = vdwg.mxu0
      %v767 = vadd.f32 %v201, %v705
      %v768 = vadd.f32 %v202, %v708
      %v769 = vadd.f32 %v203, %v713
      %v770 = vadd.f32 %v204, %v716
      %v771 = vadd.f32 %v205, %v721
      %v772 = vadd.f32 %v206, %v724
      %v773 = vadd.f32 %v207, %v729
      %v774 = vadd.f32 %v208, %v732
      %v775 = vadd.f32 %v209, %v737
      %v776 = vadd.f32 %v210, %v740
      %v777 = vadd.f32 %v211, %v745
      %v778 = vadd.f32 %v212, %v748
      %v779 = vadd.f32 %v213, %v753
      %v780 = vadd.f32 %v214, %v756
      %v781 = vadd.f32 %v215, %v761
      %v782 = vadd.f32 %v216, %v764
      %vm783 = vcmask 523264
      %784 = vst.msk [vmem:[#allocation2] sm:$0xff] %vm783, %v767
      %785 = vst.msk [vmem:[#allocation2 + $0x8] sm:$0xff] %vm783, %v768
      %786 = vst.msk [vmem:[#allocation2 + $0x10] sm:$0xff] %vm783, %v769
      %787 = vst.msk [vmem:[#allocation2 + $0x18] sm:$0xff] %vm783, %v770
      %788 = vst.msk [vmem:[#allocation2 + $0x20] sm:$0xff] %vm783, %v771
      %789 = vst.msk [vmem:[#allocation2 + $0x28] sm:$0xff] %vm783, %v772
      %790 = vst.msk [vmem:[#allocation2 + $0x30] sm:$0xff] %vm783, %v773
      %791 = vst.msk [vmem:[#allocation2 + $0x38] sm:$0xff] %vm783, %v774
      %792 = vst.msk [vmem:[#allocation2 + $0x40] sm:$0xff] %vm783, %v775
      %793 = vst.msk [vmem:[#allocation2 + $0x48] sm:$0xff] %vm783, %v776
      %794 = vst.msk [vmem:[#allocation2 + $0x50] sm:$0xff] %vm783, %v777
      %795 = vst.msk [vmem:[#allocation2 + $0x58] sm:$0xff] %vm783, %v778
      %796 = vst.msk [vmem:[#allocation2 + $0x60] sm:$0xff] %vm783, %v779
      %797 = vst.msk [vmem:[#allocation2 + $0x68] sm:$0xff] %vm783, %v780
      %798 = vst.msk [vmem:[#allocation2 + $0x70] sm:$0xff] %vm783, %v781
      %799 = vst.msk [vmem:[#allocation2 + $0x78] sm:$0xff] %vm783, %v782
      // Predicated region
      $region33: #{lightgcn_propagate.2} parent=27 // pred_check
        %p800 = pneg %p179
      $region34: #{lightgcn_propagate.2} parent=27 // pred_check_branch
        %802 = sbr.rel (%p800) target = $region36
      $region35: #{lightgcn_propagate.2} parent=27 // pred_region
        %v803 = vld [vmem:[#allocation2] sm:$0xff]
        %v804 = vld [vmem:[#allocation2 + $0x8] sm:$0xff]
        %v805 = vld [vmem:[#allocation2 + $0x10] sm:$0xff]
        %v806 = vld [vmem:[#allocation2 + $0x18] sm:$0xff]
        %v807 = vld [vmem:[#allocation2 + $0x20] sm:$0xff]
        %v808 = vld [vmem:[#allocation2 + $0x28] sm:$0xff]
        %v809 = vld [vmem:[#allocation2 + $0x30] sm:$0xff]
        %v810 = vld [vmem:[#allocation2 + $0x38] sm:$0xff]
        %v811 = vld [vmem:[#allocation2 + $0x40] sm:$0xff]
        %v812 = vld [vmem:[#allocation2 + $0x48] sm:$0xff]
        %v813 = vld [vmem:[#allocation2 + $0x50] sm:$0xff]
        %v814 = vld [vmem:[#allocation2 + $0x58] sm:$0xff]
        %v815 = vld [vmem:[#allocation2 + $0x60] sm:$0xff]
        %v816 = vld [vmem:[#allocation2 + $0x68] sm:$0xff]
        %v817 = vld [vmem:[#allocation2 + $0x70] sm:$0xff]
        %v818 = vld [vmem:[#allocation2 + $0x78] sm:$0xff]
        %v819 = vpack.c.bf16 %v804, %v803
        %v820 = vpack.c.bf16 %v806, %v805
        %v821 = vpack.c.bf16 %v808, %v807
        %v822 = vpack.c.bf16 %v810, %v809
        %v823 = vpack.c.bf16 %v812, %v811
        %v824 = vpack.c.bf16 %v814, %v813
        %v825 = vpack.c.bf16 %v816, %v815
        %v826 = vpack.c.bf16 %v818, %v817
        %v835 = vunpack.c.l.b16 %v819
        %v836 = vunpack.c.h.b16 %v819
        %v837 = vunpack.c.l.b16 %v820
        %v838 = vunpack.c.h.b16 %v820
        %v839 = vunpack.c.l.b16 %v821
        %v840 = vunpack.c.h.b16 %v821
        %v841 = vunpack.c.l.b16 %v822
        %v842 = vunpack.c.h.b16 %v822
        %v843 = vunpack.c.l.b16 %v823
        %v844 = vunpack.c.h.b16 %v823
        %v845 = vunpack.c.l.b16 %v824
        %v846 = vunpack.c.h.b16 %v824
        %v847 = vunpack.c.l.b16 %v825
        %v848 = vunpack.c.h.b16 %v825
        %v849 = vunpack.c.l.b16 %v826
        %v850 = vunpack.c.h.b16 %v826
        %v851 = vpack.c.b16 %v835, %v835
        %v852 = vpack.c.b16 %v836, %v836
        %v853 = vpack.c.b16 %v837, %v837
        %v854 = vpack.c.b16 %v838, %v838
        %v855 = vpack.c.b16 %v839, %v839
        %v856 = vpack.c.b16 %v840, %v840
        %v857 = vpack.c.b16 %v841, %v841
        %v858 = vpack.c.b16 %v842, %v842
        %v859 = vpack.c.b16 %v843, %v843
        %v860 = vpack.c.b16 %v844, %v844
        %v861 = vpack.c.b16 %v845, %v845
        %v862 = vpack.c.b16 %v846, %v846
        %v863 = vpack.c.b16 %v847, %v847
        %v864 = vpack.c.b16 %v848, %v848
        %v865 = vpack.c.b16 %v849, %v849
        %v866 = vpack.c.b16 %v850, %v850
        %vm883 = vcmask 519168
        %884 = vst.msk [vmem:[%s176] sm:$0xf] %vm883, %v851
        %885 = vst.msk [vmem:[%s176 + $0x4] sm:$0xf] %vm883, %v852
        %886 = vst.msk [vmem:[%s176 + $0x8] sm:$0xf] %vm883, %v853
        %887 = vst.msk [vmem:[%s176 + $0xc] sm:$0xf] %vm883, %v854
        %888 = vst.msk [vmem:[%s176 + $0x10] sm:$0xf] %vm883, %v855
        %889 = vst.msk [vmem:[%s176 + $0x14] sm:$0xf] %vm883, %v856
        %890 = vst.msk [vmem:[%s176 + $0x18] sm:$0xf] %vm883, %v857
        %891 = vst.msk [vmem:[%s176 + $0x1c] sm:$0xf] %vm883, %v858
        %892 = vst.msk [vmem:[%s176 + $0x20] sm:$0xf] %vm883, %v859
        %893 = vst.msk [vmem:[%s176 + $0x24] sm:$0xf] %vm883, %v860
        %894 = vst.msk [vmem:[%s176 + $0x28] sm:$0xf] %vm883, %v861
        %895 = vst.msk [vmem:[%s176 + $0x2c] sm:$0xf] %vm883, %v862
        %896 = vst.msk [vmem:[%s176 + $0x30] sm:$0xf] %vm883, %v863
        %897 = vst.msk [vmem:[%s176 + $0x34] sm:$0xf] %vm883, %v864
        %898 = vst.msk [vmem:[%s176 + $0x38] sm:$0xf] %vm883, %v865
        %899 = vst.msk [vmem:[%s176 + $0x3c] sm:$0xf] %vm883, %v866
      $region36: #{lightgcn_propagate.2} parent=27 // pred_fallthru
        _
      %s900 = smul.u32 16, %s17
      %p901 = scmp.lt.s32.totalorder %s900, 47
      %s902 = scalar_select %p901, %s900, 47
      %s903 = smul.addr %s902, 4
      %s904 = scalar_lea.vmem %s2, %s903
      // Predicated region
      $region37: #{lightgcn_propagate.2} parent=27 // pred_check
        %p905 = pneg %p92
      $region38: #{lightgcn_propagate.2} parent=27 // pred_check_branch
        %907 = sbr.rel (%p905) target = $region40
      $region39: #{lightgcn_propagate.2} parent=27 // pred_region
        %s908 = smul.u32 16, %s17
      $region40: #{lightgcn_propagate.2} parent=27 // pred_fallthru
        _
    $region28: #{lightgcn_propagate.2} parent=5 // pred_fallthru
      _
    %p909 = scmp.le.s32.totalorder 2, %s8
    // Predicated region
    $region41: #{lightgcn_propagate.2} parent=5 // pred_check
      %p910 = pneg %p909
    $region42: #{lightgcn_propagate.2} parent=5 // pred_check_branch
      %912 = sbr.rel (%p910) target = $region44
    $region43: #{lightgcn_propagate.2} parent=5 // pred_region
      %s913 = ssub.s32 %s8, 2
      // Predicated region
      $region45: #{lightgcn_propagate.2} parent=43 // pred_check
        %p914 = pneg %p98
      $region46: #{lightgcn_propagate.2} parent=43 // pred_check_branch
        %916 = sbr.rel (%p914) target = $region48
      $region47: #{lightgcn_propagate.2} parent=43 // pred_region
        %s917 = smul.u32 16, %s19
        %p918 = scmp.lt.s32.totalorder %s917, 47
        %s919 = scalar_select %p918, %s917, 47
        %s920 = smul.addr %s919, 4
        %s921 = scalar_lea.vmem %s2, %s920
      $region48: #{lightgcn_propagate.2} parent=43 // pred_fallthru
        _
    $region44: #{lightgcn_propagate.2} parent=5 // pred_fallthru
      _
  $region6: #{lightgcn_propagate.2} parent=0 // loop_footer
    %s12 = sadd.s32 1, %s8
  $region7: #{lightgcn_propagate.2} parent=0 // loop_footer_branch
    %7 = sbr.rel target = $region3
  $region8: #{lightgcn_propagate.2} parent=0 // loop_exit
    _

// kernel: lightgcn_propagate.3
$region0: #{lightgcn_propagate.3}
  #allocation0 [shape = 'u32[]', space=smem, size = 0x4, offset = 0x4, fixed_abs, tag = 'smem constant byte address 0x4 - core index']
  #allocation1 [shape = 'u32[144,128]{1,0:T(1,128)}', space=vmem, size = 0x12000, scoped, tag = 'internal scratch']
  #allocation2 [shape = 'f32[128,64]{1,0:T(8,128)}', space=vmem, size = 0x10000, scoped, tag = 'scratch operand']
  %s0 = inlined_call_operand.vmem [shape: bf16[384,384], index: 0, kind: input, shape index: {}]
  %s1 = inlined_call_operand.vmem [shape: bf16[384,64], index: 1, kind: input, shape index: {}, may-alias: {1,3}]
  %s2 = inlined_call_operand.vmem [shape: f32[384,64], index: 2, kind: input, shape index: {}]
  %s3 = inlined_call_operand.vmem [shape: bf16[384,64], index: 3, kind: input, shape index: {}, may-alias: {1,3}]
  %s4 = inlined_call_operand.vmem [shape: f32[384,64], index: 4, kind: output, shape index: {}]
  %s5 = sld [smem:[#allocation0]]
  $region57: #{lightgcn_propagate.3} parent=0
    _
  %s7 = ssub.s32 1, %s5
  %s8 = scalar_select 0, %s7, %s5
  loop: start=0, step=1, limit=5
  $region2: #{lightgcn_propagate.3} parent=0 // loop_pre_header
    _
  $region3: #{lightgcn_propagate.3} parent=0 // loop_header
    %s10 = sphi 0, %s14
    %p11 = scmp.ge.s32.totalorder %s10, 5
    %s17 = sphi 0, %s29
    %s18 = sphi 0, %s25
    %s19 = sphi 0, %s17
    %s20 = sphi 0, %s18
    %s21 = sphi 0, %s19
    %s22 = sphi 0, %s20
    %s34 = sphi 0, %s36
    %s37 = sphi 0, %s34
    %s38 = sphi 0, %s37
    %s54 = sphi 0, %s38
    %s58 = sphi 0, %s58
    %s60 = sphi 0, %s58
    %s61 = sphi 0, %s60
    %s75 = sphi 0, %s61
    %s81 = sphi 0, %s83
    %s84 = sphi 0, %s81
    %s85 = sphi 0, %s84
    %s101 = sphi 0, %s85
    %s107 = sphi 0, %s109
    %s110 = sphi 0, %s107
    %s111 = sphi 0, %s110
    %s127 = sphi 0, %s111
    %s133 = sphi 0, %s135
    %s136 = sphi 0, %s133
    %s137 = sphi 0, %s136
    %s153 = sphi 0, %s137
  $region4: #{lightgcn_propagate.3} parent=0 // loop_header_branch
    %13 = sbr.rel (%p11) target = $region8
  $region5: #{lightgcn_propagate.3} parent=0 // loop_body
    %s15 = ssub.s32 %s10, 1
    %s16 = ssub.s32 %s10, 2
    %s23 = sadd.s32 1, %s18
    %p24 = scmp.ge.s32.totalorder %s23, 1
    %s25 = scalar_select %p24, 0, %s23
    %s26 = sadd.s32 1, %s17
    %s27 = scalar_select %p24, %s26, %s17
    %p28 = scmp.ge.s32.totalorder %s27, 3
    %s29 = scalar_select %p28, 0, %s27
    %s30 = ssub.s32 %s17, %s29
    %s31 = ssub.s32 %s18, %s25
    %s32 = sor.u32 %s30, %s31
    %p33 = scmp.eq.s32.totalorder %s32, 0
    %s35 = sadd.s32 %s34, 1
    %s36 = scalar_select %p33, %s34, %s35
    %p39 = pneg %p33
    %p40 = scmp.eq.s32.totalorder %s10, 2
    %p41 = por %p39, %p40
    %p42 = scmp.ne.s32.totalorder %s34, %s37
    %p43 = scmp.eq.s32.totalorder %s10, 0
    %p44 = por %p42, %p43
    %p45 = scmp.ne.s32.totalorder %s34, %s37
    %p46 = scmp.eq.s32.totalorder %s15, 2
    %p47 = por %p45, %p46
    %p48 = scmp.ne.s32.totalorder %s37, %s38
    %p49 = scmp.eq.s32.totalorder %s15, 0
    %p50 = por %p48, %p49
    %p51 = scmp.ne.s32.totalorder %s37, %s38
    %p52 = scmp.eq.s32.totalorder %s16, 2
    %p53 = por %p51, %p52
    %p55 = scmp.ne.s32.totalorder %s38, %s54
    %p56 = scmp.eq.s32.totalorder %s16, 0
    %p57 = por %p55, %p56
    %s59 = sadd.s32 %s58, 1
    %p62 = scmp.eq.s32.totalorder %s10, 2
    %p63 = scmp.ne.s32.totalorder %s58, %s60
    %p64 = scmp.eq.s32.totalorder %s10, 0
    %p65 = por %p63, %p64
    %p66 = scmp.ne.s32.totalorder %s58, %s60
    %p67 = scmp.eq.s32.totalorder %s15, 2
    %p68 = por %p66, %p67
    %p69 = scmp.ne.s32.totalorder %s60, %s61
    %p70 = scmp.eq.s32.totalorder %s15, 0
    %p71 = por %p69, %p70
    %p72 = scmp.ne.s32.totalorder %s60, %s61
    %p73 = scmp.eq.s32.totalorder %s16, 2
    %p74 = por %p72, %p73
    %p76 = scmp.ne.s32.totalorder %s61, %s75
    %p77 = scmp.eq.s32.totalorder %s16, 0
    %p78 = por %p76, %p77
    %s79 = ssub.s32 %s17, %s29
    %p80 = scmp.eq.s32.totalorder %s79, 0
    %s82 = sadd.s32 %s81, 1
    %s83 = scalar_select %p80, %s81, %s82
    %p86 = pneg %p80
    %p87 = scmp.eq.s32.totalorder %s10, 2
    %p88 = por %p86, %p87
    %p89 = scmp.ne.s32.totalorder %s81, %s84
    %p90 = scmp.eq.s32.totalorder %s10, 0
    %p91 = por %p89, %p90
    %p92 = scmp.ne.s32.totalorder %s81, %s84
    %p93 = scmp.eq.s32.totalorder %s15, 2
    %p94 = por %p92, %p93
    %p95 = scmp.ne.s32.totalorder %s84, %s85
    %p96 = scmp.eq.s32.totalorder %s15, 0
    %p97 = por %p95, %p96
    %p98 = scmp.ne.s32.totalorder %s84, %s85
    %p99 = scmp.eq.s32.totalorder %s16, 2
    %p100 = por %p98, %p99
    %p102 = scmp.ne.s32.totalorder %s85, %s101
    %p103 = scmp.eq.s32.totalorder %s16, 0
    %p104 = por %p102, %p103
    %s105 = ssub.s32 %s17, %s29
    %p106 = scmp.eq.s32.totalorder %s105, 0
    %s108 = sadd.s32 %s107, 1
    %s109 = scalar_select %p106, %s107, %s108
    %p112 = pneg %p106
    %p113 = scmp.eq.s32.totalorder %s10, 2
    %p114 = por %p112, %p113
    %p115 = scmp.ne.s32.totalorder %s107, %s110
    %p116 = scmp.eq.s32.totalorder %s10, 0
    %p117 = por %p115, %p116
    %p118 = scmp.ne.s32.totalorder %s107, %s110
    %p119 = scmp.eq.s32.totalorder %s15, 2
    %p120 = por %p118, %p119
    %p121 = scmp.ne.s32.totalorder %s110, %s111
    %p122 = scmp.eq.s32.totalorder %s15, 0
    %p123 = por %p121, %p122
    %p124 = scmp.ne.s32.totalorder %s110, %s111
    %p125 = scmp.eq.s32.totalorder %s16, 2
    %p126 = por %p124, %p125
    %p128 = scmp.ne.s32.totalorder %s111, %s127
    %p129 = scmp.eq.s32.totalorder %s16, 0
    %p130 = por %p128, %p129
    %s131 = ssub.s32 %s17, %s29
    %p132 = scmp.eq.s32.totalorder %s131, 0
    %s134 = sadd.s32 %s133, 1
    %s135 = scalar_select %p132, %s133, %s134
    %p138 = pneg %p132
    %p139 = scmp.eq.s32.totalorder %s10, 2
    %p140 = por %p138, %p139
    %p141 = scmp.ne.s32.totalorder %s133, %s136
    %p142 = scmp.eq.s32.totalorder %s10, 0
    %p143 = por %p141, %p142
    %p144 = scmp.ne.s32.totalorder %s133, %s136
    %p145 = scmp.eq.s32.totalorder %s15, 2
    %p146 = por %p144, %p145
    %p147 = scmp.ne.s32.totalorder %s136, %s137
    %p148 = scmp.eq.s32.totalorder %s15, 0
    %p149 = por %p147, %p148
    %p150 = scmp.ne.s32.totalorder %s136, %s137
    %p151 = scmp.eq.s32.totalorder %s16, 2
    %p152 = por %p150, %p151
    %p154 = scmp.ne.s32.totalorder %s137, %s153
    %p155 = scmp.eq.s32.totalorder %s16, 0
    %p156 = por %p154, %p155
    %p157 = scmp.le.s32.totalorder 1, %s10
    %p158 = scmp.lt.s32.totalorder %s10, 4
    %p159 = pnand %p157, %p158
    %p160 = pneg %p159
    // Predicated region
    $region9: #{lightgcn_propagate.3} parent=5 // pred_check
      _
    $region10: #{lightgcn_propagate.3} parent=5 // pred_check_branch
      %162 = sbr.rel (%p159) target = $region12
    $region11: #{lightgcn_propagate.3} parent=5 // pred_region
      %s163 = ssub.s32 %s10, 1
      // Predicated region
      $region13: #{lightgcn_propagate.3} parent=11 // pred_check
        %p164 = pneg %p71
      $region14: #{lightgcn_propagate.3} parent=11 // pred_check_branch
        %166 = sbr.rel (%p164) target = $region16
      $region15: #{lightgcn_propagate.3} parent=11 // pred_region
        _
      $region16: #{lightgcn_propagate.3} parent=11 // pred_fallthru
        _
    $region12: #{lightgcn_propagate.3} parent=5 // pred_fallthru
      _
    %p167 = scmp.lt.s32.totalorder %s10, 3
    // Predicated region
    $region17: #{lightgcn_propagate.3} parent=5 // pred_check
      %p168 = pneg %p167
    $region18: #{lightgcn_propagate.3} parent=5 // pred_check_branch
      %170 = sbr.rel (%p168) target = $region20
    $region19: #{lightgcn_propagate.3} parent=5 // pred_region
      // Predicated region
      $region21: #{lightgcn_propagate.3} parent=19 // pred_check
        %p171 = pneg %p44
      $region22: #{lightgcn_propagate.3} parent=19 // pred_check_branch
        %173 = sbr.rel (%p171) target = $region24
      $region23: #{lightgcn_propagate.3} parent=19 // pred_region
        %s174 = smul.u32 16, %s17
        %s175 = smul.u32 3, %s18
        %p176 = scmp.lt.s32.totalorder %s174, 47
        %s177 = scalar_select %p176, %s174, 47
        %p178 = scmp.lt.s32.totalorder %s175, 2
        %s179 = scalar_select %p178, %s175, 2
        %s180 = smul.addr %s177, 3
        %s181 = sadd.s32 %s179, %s180
        %s182 = smul.addr %s181, 4
        %s183 = scalar_lea.vmem %s0, %s182
        %s184 = smul.u32 16, %s17
        %s185 = smul.u32 3, %s18
      $region24: #{lightgcn_propagate.3} parent=19 // pred_fallthru
        _
      // Predicated region
      $region25: #{lightgcn_propagate.3} parent=19 // pred_check
        %p186 = pneg %p91
      $region26: #{lightgcn_propagate.3} parent=19 // pred_check_branch
        %188 = sbr.rel (%p186) target = $region28
      $region27: #{lightgcn_propagate.3} parent=19 // pred_region
        %s189 = smul.u32 16, %s17
        %p190 = scmp.lt.s32.totalorder %s189, 47
        %s191 = scalar_select %p190, %s189, 47
        %s192 = smul.addr %s191, 8
        %s193 = scalar_lea.vmem %s2, %s192
        %s194 = smul.u32 16, %s17
      $region28: #{lightgcn_propagate.3} parent=19 // pred_fallthru
        _
      // Predicated region
      $region29: #{lightgcn_propagate.3} parent=19 // pred_check
        %p195 = pneg %p117
      $region30: #{lightgcn_propagate.3} parent=19 // pred_check_branch
        %197 = sbr.rel (%p195) target = $region32
      $region31: #{lightgcn_propagate.3} parent=19 // pred_region
        %s198 = smul.u32 16, %s17
        %p199 = scmp.lt.s32.totalorder %s198, 47
        %s200 = scalar_select %p199, %s198, 47
        %s201 = smul.addr %s200, 4
        %s202 = scalar_lea.vmem %s3, %s201
        %s203 = smul.u32 16, %s17
      $region32: #{lightgcn_propagate.3} parent=19 // pred_fallthru
        _
    $region20: #{lightgcn_propagate.3} parent=5 // pred_fallthru
      _
    %p204 = scmp.le.s32.totalorder 1, %s10
    %p205 = scmp.lt.s32.totalorder %s10, 4
    %p206 = pnand %p204, %p205
    %p207 = pneg %p206
    // Predicated region
    $region33: #{lightgcn_propagate.3} parent=5 // pred_check
      _
    $region34: #{lightgcn_propagate.3} parent=5 // pred_check_branch
      %209 = sbr.rel (%p206) target = $region36
    $region35: #{lightgcn_propagate.3} parent=5 // pred_region
      %s210 = ssub.s32 %s10, 1
      %s211 = smul.u32 16, %s19
      %s212 = smul.u32 3, %s20
      %p213 = scmp.lt.s32.totalorder %s211, 47
      %s214 = scalar_select %p213, %s211, 47
      %p215 = scmp.lt.s32.totalorder %s212, 2
      %s216 = scalar_select %p215, %s212, 2
      %s217 = smul.addr %s214, 3
      %s218 = sadd.s32 %s216, %s217
      %s219 = smul.addr %s218, 4
      %s220 = scalar_lea.vmem %s0, %s219
      %p221 = pneg %p50
      %p222 = pneg %p47
      %p223 = pneg %p71
      %p224 = pneg %p68
      %s225 = smul.u32 16, %s19
      %p226 = scmp.lt.s32.totalorder %s225, 47
      %s227 = scalar_select %p226, %s225, 47
      %s228 = smul.addr %s227, 8
      %s229 = scalar_lea.vmem %s2, %s228
      %p230 = pneg %p97
      %p231 = pneg %p94
      %s232 = smul.u32 16, %s19
      %p233 = scmp.lt.s32.totalorder %s232, 47
      %s234 = scalar_select %p233, %s232, 47
      %s235 = smul.addr %s234, 4
      %s236 = scalar_lea.vmem %s3, %s235
      %p237 = pneg %p123
      %p238 = pneg %p120
      %p239 = pneg %p149
      %p240 = pneg %p146
      %s241 = smul.u32 16, %s19
      %p242 = scmp.lt.s32.totalorder %s241, 47
      %s243 = scalar_select %p242, %s241, 47
      %s244 = smul.addr %s243, 8
      %s245 = scalar_lea.vmem %s4, %s244
      %s246 = smul.u32 16, %s19
      %s247 = smul.u32 3, %s20
      %p248 = scmp.lt.s32.totalorder %s246, 47
      %s249 = scalar_select %p248, %s246, 47
      %p250 = scmp.lt.s32.totalorder %s247, 2
      %s251 = scalar_select %p250, %s247, 2
      %s252 = smul.addr %s249, 3
      %s253 = sadd.s32 %s251, %s252
      %s254 = smul.addr %s253, 4
      %s255 = scalar_lea.vmem %s0, %s254
      %s256 = smul.u32 16, %s19
      %s257 = smul.u32 3, %s20
      %s258 = smul.u32 16, %s19
      %p259 = scmp.lt.s32.totalorder %s258, 47
      %s260 = scalar_select %p259, %s258, 47
      %s261 = smul.addr %s260, 8
      %s262 = scalar_lea.vmem %s2, %s261
      %s263 = smul.u32 16, %s19
      %s264 = smul.u32 16, %s19
      %p265 = scmp.lt.s32.totalorder %s264, 47
      %s266 = scalar_select %p265, %s264, 47
      %s267 = smul.addr %s266, 4
      %s268 = scalar_lea.vmem %s3, %s267
      %s269 = smul.u32 16, %s19
      %s270 = smul.u32 16, %s19
      %p271 = scmp.lt.s32.totalorder %s270, 47
      %s272 = scalar_select %p271, %s270, 47
      %s273 = smul.addr %s272, 8
      %s274 = scalar_lea.vmem %s4, %s273
      %s275 = smul.u32 16, %s19
      %p277 = scmp.eq.s32.totalorder %s20, 0
      // Predicated region
      $region37: #{lightgcn_propagate.3} parent=35 // pred_check
        %p278 = pneg %p277
      $region38: #{lightgcn_propagate.3} parent=35 // pred_check_branch
        %280 = sbr.rel (%p278) target = $region40
      $region39: #{lightgcn_propagate.3} parent=35 // pred_region
        %vm281 = vcmask 523264
        %282 = vst.msk [vmem:[#allocation2] sm:$0xff] %vm281, 0.0
        %283 = vst.msk [vmem:[#allocation2 + $0x8] sm:$0xff] %vm281, 0.0
        %284 = vst.msk [vmem:[#allocation2 + $0x10] sm:$0xff] %vm281, 0.0
        %285 = vst.msk [vmem:[#allocation2 + $0x18] sm:$0xff] %vm281, 0.0
        %286 = vst.msk [vmem:[#allocation2 + $0x20] sm:$0xff] %vm281, 0.0
        %287 = vst.msk [vmem:[#allocation2 + $0x28] sm:$0xff] %vm281, 0.0
        %288 = vst.msk [vmem:[#allocation2 + $0x30] sm:$0xff] %vm281, 0.0
        %289 = vst.msk [vmem:[#allocation2 + $0x38] sm:$0xff] %vm281, 0.0
        %290 = vst.msk [vmem:[#allocation2 + $0x40] sm:$0xff] %vm281, 0.0
        %291 = vst.msk [vmem:[#allocation2 + $0x48] sm:$0xff] %vm281, 0.0
        %292 = vst.msk [vmem:[#allocation2 + $0x50] sm:$0xff] %vm281, 0.0
        %293 = vst.msk [vmem:[#allocation2 + $0x58] sm:$0xff] %vm281, 0.0
        %294 = vst.msk [vmem:[#allocation2 + $0x60] sm:$0xff] %vm281, 0.0
        %295 = vst.msk [vmem:[#allocation2 + $0x68] sm:$0xff] %vm281, 0.0
        %296 = vst.msk [vmem:[#allocation2 + $0x70] sm:$0xff] %vm281, 0.0
        %297 = vst.msk [vmem:[#allocation2 + $0x78] sm:$0xff] %vm281, 0.0
      $region40: #{lightgcn_propagate.3} parent=35 // pred_fallthru
        _
      %s298 = smul.u32 %s20, 384
      %v299 = vld [vmem:[#allocation2] sm:$0xff]
      %v300 = vld [vmem:[#allocation2 + $0x8] sm:$0xff]
      %v301 = vld [vmem:[#allocation2 + $0x10] sm:$0xff]
      %v302 = vld [vmem:[#allocation2 + $0x18] sm:$0xff]
      %v303 = vld [vmem:[#allocation2 + $0x20] sm:$0xff]
      %v304 = vld [vmem:[#allocation2 + $0x28] sm:$0xff]
      %v305 = vld [vmem:[#allocation2 + $0x30] sm:$0xff]
      %v306 = vld [vmem:[#allocation2 + $0x38] sm:$0xff]
      %v307 = vld [vmem:[#allocation2 + $0x40] sm:$0xff]
      %v308 = vld [vmem:[#allocation2 + $0x48] sm:$0xff]
      %v309 = vld [vmem:[#allocation2 + $0x50] sm:$0xff]
      %v310 = vld [vmem:[#allocation2 + $0x58] sm:$0xff]
      %v311 = vld [vmem:[#allocation2 + $0x60] sm:$0xff]
      %v312 = vld [vmem:[#allocation2 + $0x68] sm:$0xff]
      %v313 = vld [vmem:[#allocation2 + $0x70] sm:$0xff]
      %v314 = vld [vmem:[#allocation2 + $0x78] sm:$0xff]
      %v315 = vld [vmem:[%s255] sm:$0xff]
      %v316 = vld [vmem:[%s255 + $0x8] sm:$0xf]
      %v317 = vld [vmem:[%s255 + $0xc] sm:$0xff]
      %v318 = vld [vmem:[%s255 + $0x14] sm:$0xf]
      %v319 = vld [vmem:[%s255 + $0x18] sm:$0xff]
      %v320 = vld [vmem:[%s255 + $0x20] sm:$0xf]
      %v321 = vld [vmem:[%s255 + $0x24] sm:$0xff]
      %v322 = vld [vmem:[%s255 + $0x2c] sm:$0xf]
      %v323 = vld [vmem:[%s255 + $0x30] sm:$0xff]
      %v324 = vld [vmem:[%s255 + $0x38] sm:$0xf]
      %v325 = vld [vmem:[%s255 + $0x3c] sm:$0xff]
      %v326 = vld [vmem:[%s255 + $0x44] sm:$0xf]
      %v327 = vld [vmem:[%s255 + $0x48] sm:$0xff]
      %v328 = vld [vmem:[%s255 + $0x50] sm:$0xf]
      %v329 = vld [vmem:[%s255 + $0x54] sm:$0xff]
      %v330 = vld [vmem:[%s255 + $0x5c] sm:$0xf]
      %v331 = vld [vmem:[%s255 + $0x60] sm:$0xff]
      %v332 = vld [vmem:[%s255 + $0x68] sm:$0xf]
      %v333 = vld [vmem:[%s255 + $0x6c] sm:$0xff]
      %v334 = vld [vmem:[%s255 + $0x74] sm:$0xf]
      %v335 = vld [vmem:[%s255 + $0x78] sm:$0xff]
      %v336 = vld [vmem:[%s255 + $0x80] sm:$0xf]
      %v337 = vld [vmem:[%s255 + $0x84] sm:$0xff]
      %v338 = vld [vmem:[%s255 + $0x8c] sm:$0xf]
      %v339 = vld [vmem:[%s255 + $0x90] sm:$0xff]
      %v340 = vld [vmem:[%s255 + $0x98] sm:$0xf]
      %v341 = vld [vmem:[%s255 + $0x9c] sm:$0xff]
      %v342 = vld [vmem:[%s255 + $0xa4] sm:$0xf]
      %v343 = vld [vmem:[%s255 + $0xa8] sm:$0xff]
      %v344 = vld [vmem:[%s255 + $0xb0] sm:$0xf]
      %v345 = vld [vmem:[%s255 + $0xb4] sm:$0xff]
      %v346 = vld [vmem:[%s255 + $0xbc] sm:$0xf]
      %s347 = sshra.s32 %s298, 3
      %s348 = sand.u32 %s298, 7
      %s349 = smul.addr %s347, 4
      %s350 = scalar_lea.vmem %s1, %s349
      %v351 = vld [vmem:[%s350] sm:$0xf]
      %v352 = vld [vmem:[%s350 + $0x4] sm:$0xf]
      %v353 = vld [vmem:[%s350 + $0x8] sm:$0xf]
      %v354 = vld [vmem:[%s350 + $0xc] sm:$0xf]
      %v355 = vld [vmem:[%s350 + $0x10] sm:$0xf]
      %v356 = vld [vmem:[%s350 + $0x14] sm:$0xf]
      %v357 = vld [vmem:[%s350 + $0x18] sm:$0xf]
      %v358 = vld [vmem:[%s350 + $0x1c] sm:$0xf]
      %v359 = vld [vmem:[%s350 + $0x20] sm:$0xf]
      %v360 = vld [vmem:[%s350 + $0x24] sm:$0xf]
      %v361 = vld [vmem:[%s350 + $0x28] sm:$0xf]
      %v362 = vld [vmem:[%s350 + $0x2c] sm:$0xf]
      %v363 = vld [vmem:[%s350 + $0x30] sm:$0xf]
      %v364 = vld [vmem:[%s350 + $0x34] sm:$0xf]
      %v365 = vld [vmem:[%s350 + $0x38] sm:$0xf]
      %v366 = vld [vmem:[%s350 + $0x3c] sm:$0xf]
      %v367 = vld [vmem:[%s350 + $0x40] sm:$0xf]
      %v368 = vld [vmem:[%s350 + $0x44] sm:$0xf]
      %v369 = vld [vmem:[%s350 + $0x48] sm:$0xf]
      %v370 = vld [vmem:[%s350 + $0x4c] sm:$0xf]
      %v371 = vld [vmem:[%s350 + $0x50] sm:$0xf]
      %v372 = vld [vmem:[%s350 + $0x54] sm:$0xf]
      %v373 = vld [vmem:[%s350 + $0x58] sm:$0xf]
      %v374 = vld [vmem:[%s350 + $0x5c] sm:$0xf]
      %v375 = vld [vmem:[%s350 + $0x60] sm:$0xf]
      %v376 = vld [vmem:[%s350 + $0x64] sm:$0xf]
      %v377 = vld [vmem:[%s350 + $0x68] sm:$0xf]
      %v378 = vld [vmem:[%s350 + $0x6c] sm:$0xf]
      %v379 = vld [vmem:[%s350 + $0x70] sm:$0xf]
      %v380 = vld [vmem:[%s350 + $0x74] sm:$0xf]
      %v381 = vld [vmem:[%s350 + $0x78] sm:$0xf]
      %v382 = vld [vmem:[%s350 + $0x7c] sm:$0xf]
      %v383 = vld [vmem:[%s350 + $0x80] sm:$0xf]
      %v384 = vld [vmem:[%s350 + $0x84] sm:$0xf]
      %v385 = vld [vmem:[%s350 + $0x88] sm:$0xf]
      %v386 = vld [vmem:[%s350 + $0x8c] sm:$0xf]
      %v387 = vld [vmem:[%s350 + $0x90] sm:$0xf]
      %v388 = vld [vmem:[%s350 + $0x94] sm:$0xf]
      %v389 = vld [vmem:[%s350 + $0x98] sm:$0xf]
      %v390 = vld [vmem:[%s350 + $0x9c] sm:$0xf]
      %v391 = vld [vmem:[%s350 + $0xa0] sm:$0xf]
      %v392 = vld [vmem:[%s350 + $0xa4] sm:$0xf]
      %v393 = vld [vmem:[%s350 + $0xa8] sm:$0xf]
      %v394 = vld [vmem:[%s350 + $0xac] sm:$0xf]
      %v395 = vld [vmem:[%s350 + $0xb0] sm:$0xf]
      %v396 = vld [vmem:[%s350 + $0xb4] sm:$0xf]
      %v397 = vld [vmem:[%s350 + $0xb8] sm:$0xf]
      %v398 = vld [vmem:[%s350 + $0xbc] sm:$0xf]
      %v431 = vunpack.c.l.b16 %v315
      %v432 = vunpack.c.h.b16 %v315
      %v433 = vunpack.c.l.b16 %v316
      %v434 = vunpack.c.l.b16 %v317
      %v435 = vunpack.c.h.b16 %v317
      %v436 = vunpack.c.l.b16 %v318
      %v437 = vunpack.c.l.b16 %v319
      %v438 = vunpack.c.h.b16 %v319
      %v439 = vunpack.c.l.b16 %v320
      %v440 = vunpack.c.l.b16 %v321
      %v441 = vunpack.c.h.b16 %v321
      %v442 = vunpack.c.l.b16 %v322
      %v443 = vunpack.c.l.b16 %v323
      %v444 = vunpack.c.h.b16 %v323
      %v445 = vunpack.c.l.b16 %v324
      %v446 = vunpack.c.l.b16 %v325
      %v447 = vunpack.c.h.b16 %v325
      %v448 = vunpack.c.l.b16 %v326
      %v449 = vunpack.c.l.b16 %v327
      %v450 = vunpack.c.h.b16 %v327
      %v451 = vunpack.c.l.b16 %v328
      %v452 = vunpack.c.l.b16 %v329
      %v453 = vunpack.c.h.b16 %v329
      %v454 = vunpack.c.l.b16 %v330
      %v455 = vunpack.c.l.b16 %v331
      %v456 = vunpack.c.h.b16 %v331
      %v457 = vunpack.c.l.b16 %v332
      %v458 = vunpack.c.l.b16 %v333
      %v459 = vunpack.c.h.b16 %v333
      %v460 = vunpack.c.l.b16 %v334
      %v461 = vunpack.c.l.b16 %v335
      %v462 = vunpack.c.h.b16 %v335
      %v463 = vunpack.c.l.b16 %v336
      %v464 = vunpack.c.l.b16 %v337
      %v465 = vunpack.c.h.b16 %v337
      %v466 = vunpack.c.l.b16 %v338
      %v467 = vunpack.c.l.b16 %v339
      %v468 = vunpack.c.h.b16 %v339
      %v469 = vunpack.c.l.b16 %v340
      %v470 = vunpack.c.l.b16 %v341
      %v471 = vunpack.c.h.b16 %v341
      %v472 = vunpack.c.l.b16 %v342
      %v473 = vunpack.c.l.b16 %v343
      %v474 = vunpack.c.h.b16 %v343
      %v475 = vunpack.c.l.b16 %v344
      %v476 = vunpack.c.l.b16 %v345
      %v477 = vunpack.c.h.b16 %v345
      %v478 = vunpack.c.l.b16 %v346
      %v479 = vpack.c.b16 %v434, %v431
      %v480 = vpack.c.b16 %v435, %v432
      %v481 = vpack.c.b16 %v436, %v433
      %v482 = vpack.c.b16 %v440, %v437
      %v483 = vpack.c.b16 %v441, %v438
      %v484 = vpack.c.b16 %v442, %v439
      %v485 = vpack.c.b16 %v446, %v443
      %v486 = vpack.c.b16 %v447, %v444
      %v487 = vpack.c.b16 %v448, %v445
      %v488 = vpack.c.b16 %v452, %v449
      %v489 = vpack.c.b16 %v453, %v450
      %v490 = vpack.c.b16 %v454, %v451
      %v491 = vpack.c.b16 %v458, %v455
      %v492 = vpack.c.b16 %v459, %v456
      %v493 = vpack.c.b16 %v460, %v457
      %v494 = vpack.c.b16 %v464, %v461
      %v495 = vpack.c.b16 %v465, %v462
      %v496 = vpack.c.b16 %v466, %v463
      %v497 = vpack.c.b16 %v470, %v467
      %v498 = vpack.c.b16 %v471, %v468
      %v499 = vpack.c.b16 %v472, %v469
      %v500 = vpack.c.b16 %v476, %v473
      %v501 = vpack.c.b16 %v477, %v474
      %v502 = vpack.c.b16 %v478, %v475
      %v575 = vunpack.c.l.b16 %v351
      %v576 = vunpack.c.l.b16 %v352
      %v577 = vunpack.c.l.b16 %v353
      %v578 = vunpack.c.l.b16 %v354
      %v579 = vunpack.c.l.b16 %v355
      %v580 = vunpack.c.l.b16 %v356
      %v581 = vunpack.c.l.b16 %v357
      %v582 = vunpack.c.l.b16 %v358
      %v583 = vunpack.c.l.b16 %v359
      %v584 = vunpack.c.l.b16 %v360
      %v585 = vunpack.c.l.b16 %v361
      %v586 = vunpack.c.l.b16 %v362
      %v587 = vunpack.c.l.b16 %v363
      %v588 = vunpack.c.l.b16 %v364
      %v589 = vunpack.c.l.b16 %v365
      %v590 = vunpack.c.l.b16 %v366
      %v591 = vunpack.c.l.b16 %v367
      %v592 = vunpack.c.l.b16 %v368
      %v593 = vunpack.c.l.b16 %v369
      %v594 = vunpack.c.l.b16 %v370
      %v595 = vunpack.c.l.b16 %v371
      %v596 = vunpack.c.l.b16 %v372
      %v597 = vunpack.c.l.b16 %v373
      %v598 = vunpack.c.l.b16 %v374
      %v599 = vunpack.c.l.b16 %v375
      %v600 = vunpack.c.l.b16 %v376
      %v601 = vunpack.c.l.b16 %v377
      %v602 = vunpack.c.l.b16 %v378
      %v603 = vunpack.c.l.b16 %v379
      %v604 = vunpack.c.l.b16 %v380
      %v605 = vunpack.c.l.b16 %v381
      %v606 = vunpack.c.l.b16 %v382
      %v607 = vunpack.c.l.b16 %v383
      %v608 = vunpack.c.l.b16 %v384
      %v609 = vunpack.c.l.b16 %v385
      %v610 = vunpack.c.l.b16 %v386
      %v611 = vunpack.c.l.b16 %v387
      %v612 = vunpack.c.l.b16 %v388
      %v613 = vunpack.c.l.b16 %v389
      %v614 = vunpack.c.l.b16 %v390
      %v615 = vunpack.c.l.b16 %v391
      %v616 = vunpack.c.l.b16 %v392
      %v617 = vunpack.c.l.b16 %v393
      %v618 = vunpack.c.l.b16 %v394
      %v619 = vunpack.c.l.b16 %v395
      %v620 = vunpack.c.l.b16 %v396
      %v621 = vunpack.c.l.b16 %v397
      %v622 = vunpack.c.l.b16 %v398
      %v623 = vpack.c.b16 %v576, %v575
      %v624 = vpack.c.b16 %v578, %v577
      %v625 = vpack.c.b16 %v580, %v579
      %v626 = vpack.c.b16 %v582, %v581
      %v627 = vpack.c.b16 %v584, %v583
      %v628 = vpack.c.b16 %v586, %v585
      %v629 = vpack.c.b16 %v588, %v587
      %v630 = vpack.c.b16 %v590, %v589
      %v631 = vpack.c.b16 %v592, %v591
      %v632 = vpack.c.b16 %v594, %v593
      %v633 = vpack.c.b16 %v596, %v595
      %v634 = vpack.c.b16 %v598, %v597
      %v635 = vpack.c.b16 %v600, %v599
      %v636 = vpack.c.b16 %v602, %v601
      %v637 = vpack.c.b16 %v604, %v603
      %v638 = vpack.c.b16 %v606, %v605
      %v639 = vpack.c.b16 %v608, %v607
      %v640 = vpack.c.b16 %v610, %v609
      %v641 = vpack.c.b16 %v612, %v611
      %v642 = vpack.c.b16 %v614, %v613
      %v643 = vpack.c.b16 %v616, %v615
      %v644 = vpack.c.b16 %v618, %v617
      %v645 = vpack.c.b16 %v620, %v619
      %v646 = vpack.c.b16 %v622, %v621
      %671 = vmatprep.subr.bf16.mxu0 0
      %672 = vmatpush1.bf16.msra.mxu0 %v623
      %673 = vmatprep.subr.bf16.mxu0 0
      %674 = vmatpush1.bf16.msra.mxu0 %v624
      %675 = vmatprep.subr.bf16.mxu0 0
      %676 = vmatpush1.bf16.msra.mxu0 %v625
      %677 = vmatprep.subr.bf16.mxu0 0
      %678 = vmatpush1.bf16.msra.mxu0 %v626
      %679 = vmatprep.subr.bf16.mxu0 0
      %680 = vmatpush1.bf16.msra.mxu0 %v627
      %681 = vmatprep.subr.bf16.mxu0 0
      %682 = vmatpush1.bf16.msra.mxu0 %v628
      %683 = vmatprep.subr.bf16.mxu0 0
      %684 = vmatpush1.bf16.msra.mxu0 %v629
      %685 = vmatprep.subr.bf16.mxu0 0
      %686 = vmatpush1.bf16.msra.mxu0 %v630
      %687 = vmatprep.subr.bf16.mxu0 0
      %688 = vmatpush1.bf16.msra.mxu0 %v631
      %689 = vmatprep.subr.bf16.mxu0 0
      %690 = vmatpush1.bf16.msra.mxu0 %v632
      %691 = vmatprep.subr.bf16.mxu0 0
      %692 = vmatpush1.bf16.msra.mxu0 %v633
      %693 = vmatprep.subr.bf16.mxu0 0
      %694 = vmatpush1.bf16.msra.mxu0 %v634
      %695 = vmatprep.subr.bf16.mxu0 0
      %696 = vmatpush1.bf16.msra.mxu0 %v635
      %697 = vmatprep.subr.bf16.mxu0 0
      %698 = vmatpush1.bf16.msra.mxu0 %v636
      %699 = vmatprep.subr.bf16.mxu0 0
      %700 = vmatpush1.bf16.msra.mxu0 %v637
      %701 = vmatprep.subr.bf16.mxu0 0
      %702 = vmatpush1.bf16.msra.mxu0 %v638
      %703 = vmatprep.mubr.bf16.mxu0 %v480
      %704 = vmatmul.mubr.bf16.gmra.mrb[0].mxu0 %v479
      %v705 = vpop.f32.mrb[0].mxu0
      %v706 = vadd.f32 0.0, %v705
      %v707 = vpop.f32.mrb[0].mxu0
      %v708 = vpop.f32.mrb[0].mxu0
      %v709 = vadd.f32 0.0, %v708
      %v710 = vpop.f32.mrb[0].mxu0
      %711 = vmatprep.mubr.bf16.mxu0 %v483
      %712 = vmatmul.mubr.bf16.gmra.mrb[0].mxu0 %v482
      %v713 = vpop.f32.mrb[0].mxu0
      %v714 = vadd.f32 0.0, %v713
      %v715 = vpop.f32.mrb[0].mxu0
      %v716 = vpop.f32.mrb[0].mxu0
      %v717 = vadd.f32 0.0, %v716
      %v718 = vpop.f32.mrb[0].mxu0
      %719 = vmatprep.mubr.bf16.mxu0 %v486
      %720 = vmatmul.mubr.bf16.gmra.mrb[0].mxu0 %v485
      %v721 = vpop.f32.mrb[0].mxu0
      %v722 = vadd.f32 0.0, %v721
      %v723 = vpop.f32.mrb[0].mxu0
      %v724 = vpop.f32.mrb[0].mxu0
      %v725 = vadd.f32 0.0, %v724
      %v726 = vpop.f32.mrb[0].mxu0
      %727 = vmatprep.mubr.bf16.mxu0 %v489
      %728 = vmatmul.mubr.bf16.gmra.mrb[0].mxu0 %v488
      %v729 = vpop.f32.mrb[0].mxu0
      %v730 = vadd.f32 0.0, %v729
      %v731 = vpop.f32.mrb[0].mxu0
      %v732 = vpop.f32.mrb[0].mxu0
      %v733 = vadd.f32 0.0, %v732
      %v734 = vpop.f32.mrb[0].mxu0
      %735 = vmatprep.mubr.bf16.mxu0 %v492
      %736 = vmatmul.mubr.bf16.gmra.mrb[0].mxu0 %v491
      %v737 = vpop.f32.mrb[0].mxu0
      %v738 = vadd.f32 0.0, %v737
      %v739 = vpop.f32.mrb[0].mxu0
      %v740 = vpop.f32.mrb[0].mxu0
      %v741 = vadd.f32 0.0, %v740
      %v742 = vpop.f32.mrb[0].mxu0
      %743 = vmatprep.mubr.bf16.mxu0 %v495
      %744 = vmatmul.mubr.bf16.gmra.mrb[0].mxu0 %v494
      %v745 = vpop.f32.mrb[0].mxu0
      %v746 = vadd.f32 0.0, %v745
      %v747 = vpop.f32.mrb[0].mxu0
      %v748 = vpop.f32.mrb[0].mxu0
      %v749 = vadd.f32 0.0, %v748
      %v750 = vpop.f32.mrb[0].mxu0
      %751 = vmatprep.mubr.bf16.mxu0 %v498
      %752 = vmatmul.mubr.bf16.gmra.mrb[0].mxu0 %v497
      %v753 = vpop.f32.mrb[0].mxu0
      %v754 = vadd.f32 0.0, %v753
      %v755 = vpop.f32.mrb[0].mxu0
      %v756 = vpop.f32.mrb[0].mxu0
      %v757 = vadd.f32 0.0, %v756
      %v758 = vpop.f32.mrb[0].mxu0
      %759 = vmatprep.mubr.bf16.mxu0 %v501
      %760 = vmatmul.mubr.bf16.gmra.mrb[0].mxu0 %v500
      %v761 = vpop.f32.mrb[0].mxu0
      %v762 = vadd.f32 0.0, %v761
      %v763 = vpop.f32.mrb[0].mxu0
      %v764 = vpop.f32.mrb[0].mxu0
      %v765 = vadd.f32 0.0, %v764
      %v766 = vpop.f32.mrb[0].mxu0
      %767 = vdwg.mxu0
      %768 = vmatprep.subr.bf16.mxu0 0
      %769 = vmatpush1.bf16.msra.mxu0 %v639
      %770 = vmatprep.subr.bf16.mxu0 0
      %771 = vmatpush1.bf16.msra.mxu0 %v640
      %772 = vmatprep.subr.bf16.mxu0 0
      %773 = vmatpush1.bf16.msra.mxu0 %v641
      %774 = vmatprep.subr.bf16.mxu0 0
      %775 = vmatpush1.bf16.msra.mxu0 %v642
      %776 = vmatprep.subr.bf16.mxu0 0
      %777 = vmatpush1.bf16.msra.mxu0 %v643
      %778 = vmatprep.subr.bf16.mxu0 0
      %779 = vmatpush1.bf16.msra.mxu0 %v644
      %780 = vmatprep.subr.bf16.mxu0 0
      %781 = vmatpush1.bf16.msra.mxu0 %v645
      %782 = vmatprep.subr.bf16.mxu0 0
      %783 = vmatpush1.bf16.msra.mxu0 %v646
      %784 = vmatprep.subr.bf16.mxu0 0
      %785 = vmatpush1.bf16.msra.mxu0 0
      %786 = vmatprep.subr.bf16.mxu0 0
      %787 = vmatpush1.bf16.msra.mxu0 0
      %788 = vmatprep.subr.bf16.mxu0 0
      %789 = vmatpush1.bf16.msra.mxu0 0
      %790 = vmatprep.subr.bf16.mxu0 0
      %791 = vmatpush1.bf16.msra.mxu0 0
      %792 = vmatprep.subr.bf16.mxu0 0
      %793 = vmatpush1.bf16.msra.mxu0 0
      %794 = vmatprep.subr.bf16.mxu0 0
      %795 = vmatpush1.bf16.msra.mxu0 0
      %796 = vmatprep.subr.bf16.mxu0 0
      %797 = vmatpush1.bf16.msra.mxu0 0
      %798 = vmatprep.subr.bf16.mxu0 0
      %799 = vmatpush1.bf16.msra.mxu0 0
      %800 = vmatprep.mubr.bf16.mxu0 0
      %801 = vmatmul.mubr.bf16.gmra.mrb[0].mxu0 %v481
      %v802 = vpop.f32.mrb[0].mxu0
      %v803 = vadd.f32 %v706, %v802
      %v804 = vpop.f32.mrb[0].mxu0
      %v805 = vpop.f32.mrb[0].mxu0
      %v806 = vadd.f32 %v709, %v805
      %v807 = vpop.f32.mrb[0].mxu0
      %808 = vmatprep.mubr.bf16.mxu0 0
      %809 = vmatmul.mubr.bf16.gmra.mrb[0].mxu0 %v484
      %v810 = vpop.f32.mrb[0].mxu0
      %v811 = vadd.f32 %v714, %v810
      %v812 = vpop.f32.mrb[0].mxu0
      %v813 = vpop.f32.mrb[0].mxu0
      %v814 = vadd.f32 %v717, %v813
      %v815 = vpop.f32.mrb[0].mxu0
      %816 = vmatprep.mubr.bf16.mxu0 0
      %817 = vmatmul.mubr.bf16.gmra.mrb[0].mxu0 %v487
      %v818 = vpop.f32.mrb[0].mxu0
      %v819 = vadd.f32 %v722, %v818
      %v820 = vpop.f32.mrb[0].mxu0
      %v821 = vpop.f32.mrb[0].mxu0
      %v822 = vadd.f32 %v725, %v821
      %v823 = vpop.f32.mrb[0].mxu0
      %824 = vmatprep.mubr.bf16.mxu0 0
      %825 = vmatmul.mubr.bf16.gmra.mrb[0].mxu0 %v490
      %v826 = vpop.f32.mrb[0].mxu0
      %v827 = vadd.f32 %v730, %v826
      %v828 = vpop.f32.mrb[0].mxu0
      %v829 = vpop.f32.mrb[0].mxu0
      %v830 = vadd.f32 %v733, %v829
      %v831 = vpop.f32.mrb[0].mxu0
      %832 = vmatprep.mubr.bf16.mxu0 0
      %833 = vmatmul.mubr.bf16.gmra.mrb[0].mxu0 %v493
      %v834 = vpop.f32.mrb[0].mxu0
      %v835 = vadd.f32 %v738, %v834
      %v836 = vpop.f32.mrb[0].mxu0
      %v837 = vpop.f32.mrb[0].mxu0
      %v838 = vadd.f32 %v741, %v837
      %v839 = vpop.f32.mrb[0].mxu0
      %840 = vmatprep.mubr.bf16.mxu0 0
      %841 = vmatmul.mubr.bf16.gmra.mrb[0].mxu0 %v496
      %v842 = vpop.f32.mrb[0].mxu0
      %v843 = vadd.f32 %v746, %v842
      %v844 = vpop.f32.mrb[0].mxu0
      %v845 = vpop.f32.mrb[0].mxu0
      %v846 = vadd.f32 %v749, %v845
      %v847 = vpop.f32.mrb[0].mxu0
      %848 = vmatprep.mubr.bf16.mxu0 0
      %849 = vmatmul.mubr.bf16.gmra.mrb[0].mxu0 %v499
      %v850 = vpop.f32.mrb[0].mxu0
      %v851 = vadd.f32 %v754, %v850
      %v852 = vpop.f32.mrb[0].mxu0
      %v853 = vpop.f32.mrb[0].mxu0
      %v854 = vadd.f32 %v757, %v853
      %v855 = vpop.f32.mrb[0].mxu0
      %856 = vmatprep.mubr.bf16.mxu0 0
      %857 = vmatmul.mubr.bf16.gmra.mrb[0].mxu0 %v502
      %v858 = vpop.f32.mrb[0].mxu0
      %v859 = vadd.f32 %v762, %v858
      %v860 = vpop.f32.mrb[0].mxu0
      %v861 = vpop.f32.mrb[0].mxu0
      %v862 = vadd.f32 %v765, %v861
      %v863 = vpop.f32.mrb[0].mxu0
      %864 = vdwg.mxu0
      %v865 = vadd.f32 %v299, %v803
      %v866 = vadd.f32 %v300, %v806
      %v867 = vadd.f32 %v301, %v811
      %v868 = vadd.f32 %v302, %v814
      %v869 = vadd.f32 %v303, %v819
      %v870 = vadd.f32 %v304, %v822
      %v871 = vadd.f32 %v305, %v827
      %v872 = vadd.f32 %v306, %v830
      %v873 = vadd.f32 %v307, %v835
      %v874 = vadd.f32 %v308, %v838
      %v875 = vadd.f32 %v309, %v843
      %v876 = vadd.f32 %v310, %v846
      %v877 = vadd.f32 %v311, %v851
      %v878 = vadd.f32 %v312, %v854
      %v879 = vadd.f32 %v313, %v859
      %v880 = vadd.f32 %v314, %v862
      %vm881 = vcmask 523264
      %882 = vst.msk [vmem:[#allocation2] sm:$0xff] %vm881, %v865
      %883 = vst.msk [vmem:[#allocation2 + $0x8] sm:$0xff] %vm881, %v866
      %884 = vst.msk [vmem:[#allocation2 + $0x10] sm:$0xff] %vm881, %v867
      %885 = vst.msk [vmem:[#allocation2 + $0x18] sm:$0xff] %vm881, %v868
      %886 = vst.msk [vmem:[#allocation2 + $0x20] sm:$0xff] %vm881, %v869
      %887 = vst.msk [vmem:[#allocation2 + $0x28] sm:$0xff] %vm881, %v870
      %888 = vst.msk [vmem:[#allocation2 + $0x30] sm:$0xff] %vm881, %v871
      %889 = vst.msk [vmem:[#allocation2 + $0x38] sm:$0xff] %vm881, %v872
      %890 = vst.msk [vmem:[#allocation2 + $0x40] sm:$0xff] %vm881, %v873
      %891 = vst.msk [vmem:[#allocation2 + $0x48] sm:$0xff] %vm881, %v874
      %892 = vst.msk [vmem:[#allocation2 + $0x50] sm:$0xff] %vm881, %v875
      %893 = vst.msk [vmem:[#allocation2 + $0x58] sm:$0xff] %vm881, %v876
      %894 = vst.msk [vmem:[#allocation2 + $0x60] sm:$0xff] %vm881, %v877
      %895 = vst.msk [vmem:[#allocation2 + $0x68] sm:$0xff] %vm881, %v878
      %896 = vst.msk [vmem:[#allocation2 + $0x70] sm:$0xff] %vm881, %v879
      %897 = vst.msk [vmem:[#allocation2 + $0x78] sm:$0xff] %vm881, %v880
      // Predicated region
      $region41: #{lightgcn_propagate.3} parent=35 // pred_check
        %p898 = pneg %p277
      $region42: #{lightgcn_propagate.3} parent=35 // pred_check_branch
        %900 = sbr.rel (%p898) target = $region44
      $region43: #{lightgcn_propagate.3} parent=35 // pred_region
        %v901 = vld [vmem:[%s262] sm:$0xff]
        %v902 = vld [vmem:[%s262 + $0x8] sm:$0xff]
        %v903 = vld [vmem:[%s262 + $0x10] sm:$0xff]
        %v904 = vld [vmem:[%s262 + $0x18] sm:$0xff]
        %v905 = vld [vmem:[%s262 + $0x20] sm:$0xff]
        %v906 = vld [vmem:[%s262 + $0x28] sm:$0xff]
        %v907 = vld [vmem:[%s262 + $0x30] sm:$0xff]
        %v908 = vld [vmem:[%s262 + $0x38] sm:$0xff]
        %v909 = vld [vmem:[%s262 + $0x40] sm:$0xff]
        %v910 = vld [vmem:[%s262 + $0x48] sm:$0xff]
        %v911 = vld [vmem:[%s262 + $0x50] sm:$0xff]
        %v912 = vld [vmem:[%s262 + $0x58] sm:$0xff]
        %v913 = vld [vmem:[%s262 + $0x60] sm:$0xff]
        %v914 = vld [vmem:[%s262 + $0x68] sm:$0xff]
        %v915 = vld [vmem:[%s262 + $0x70] sm:$0xff]
        %v916 = vld [vmem:[%s262 + $0x78] sm:$0xff]
        %v917 = vld [vmem:[%s268] sm:$0xf]
        %v918 = vld [vmem:[%s268 + $0x4] sm:$0xf]
        %v919 = vld [vmem:[%s268 + $0x8] sm:$0xf]
        %v920 = vld [vmem:[%s268 + $0xc] sm:$0xf]
        %v921 = vld [vmem:[%s268 + $0x10] sm:$0xf]
        %v922 = vld [vmem:[%s268 + $0x14] sm:$0xf]
        %v923 = vld [vmem:[%s268 + $0x18] sm:$0xf]
        %v924 = vld [vmem:[%s268 + $0x1c] sm:$0xf]
        %v925 = vld [vmem:[%s268 + $0x20] sm:$0xf]
        %v926 = vld [vmem:[%s268 + $0x24] sm:$0xf]
        %v927 = vld [vmem:[%s268 + $0x28] sm:$0xf]
        %v928 = vld [vmem:[%s268 + $0x2c] sm:$0xf]
        %v929 = vld [vmem:[%s268 + $0x30] sm:$0xf]
        %v930 = vld [vmem:[%s268 + $0x34] sm:$0xf]
        %v931 = vld [vmem:[%s268 + $0x38] sm:$0xf]
        %v932 = vld [vmem:[%s268 + $0x3c] sm:$0xf]
        %v933 = vunpack.c.l.bf16 %v917
        %v934 = vunpack.c.l.bf16 %v918
        %v935 = vunpack.c.l.bf16 %v919
        %v936 = vunpack.c.l.bf16 %v920
        %v937 = vunpack.c.l.bf16 %v921
        %v938 = vunpack.c.l.bf16 %v922
        %v939 = vunpack.c.l.bf16 %v923
        %v940 = vunpack.c.l.bf16 %v924
        %v941 = vunpack.c.l.bf16 %v925
        %v942 = vunpack.c.l.bf16 %v926
        %v943 = vunpack.c.l.bf16 %v927
        %v944 = vunpack.c.l.bf16 %v928
        %v945 = vunpack.c.l.bf16 %v929
        %v946 = vunpack.c.l.bf16 %v930
        %v947 = vunpack.c.l.bf16 %v931
        %v948 = vunpack.c.l.bf16 %v932
        %v949 = vadd.f32 %v901, %v933
        %v950 = vadd.f32 %v902, %v934
        %v951 = vadd.f32 %v903, %v935
        %v952 = vadd.f32 %v904, %v936
        %v953 = vadd.f32 %v905, %v937
        %v954 = vadd.f32 %v906, %v938
        %v955 = vadd.f32 %v907, %v939
        %v956 = vadd.f32 %v908, %v940
        %v957 = vadd.f32 %v909, %v941
        %v958 = vadd.f32 %v910, %v942
        %v959 = vadd.f32 %v911, %v943
        %v960 = vadd.f32 %v912, %v944
        %v961 = vadd.f32 %v913, %v945
        %v962 = vadd.f32 %v914, %v946
        %v963 = vadd.f32 %v915, %v947
        %v964 = vadd.f32 %v916, %v948
        %v965 = vld [vmem:[#allocation2] sm:$0xff]
        %v966 = vld [vmem:[#allocation2 + $0x8] sm:$0xff]
        %v967 = vld [vmem:[#allocation2 + $0x10] sm:$0xff]
        %v968 = vld [vmem:[#allocation2 + $0x18] sm:$0xff]
        %v969 = vld [vmem:[#allocation2 + $0x20] sm:$0xff]
        %v970 = vld [vmem:[#allocation2 + $0x28] sm:$0xff]
        %v971 = vld [vmem:[#allocation2 + $0x30] sm:$0xff]
        %v972 = vld [vmem:[#allocation2 + $0x38] sm:$0xff]
        %v973 = vld [vmem:[#allocation2 + $0x40] sm:$0xff]
        %v974 = vld [vmem:[#allocation2 + $0x48] sm:$0xff]
        %v975 = vld [vmem:[#allocation2 + $0x50] sm:$0xff]
        %v976 = vld [vmem:[#allocation2 + $0x58] sm:$0xff]
        %v977 = vld [vmem:[#allocation2 + $0x60] sm:$0xff]
        %v978 = vld [vmem:[#allocation2 + $0x68] sm:$0xff]
        %v979 = vld [vmem:[#allocation2 + $0x70] sm:$0xff]
        %v980 = vld [vmem:[#allocation2 + $0x78] sm:$0xff]
        %v981 = vadd.f32 %v949, %v965
        %v982 = vadd.f32 %v950, %v966
        %v983 = vadd.f32 %v951, %v967
        %v984 = vadd.f32 %v952, %v968
        %v985 = vadd.f32 %v953, %v969
        %v986 = vadd.f32 %v954, %v970
        %v987 = vadd.f32 %v955, %v971
        %v988 = vadd.f32 %v956, %v972
        %v989 = vadd.f32 %v957, %v973
        %v990 = vadd.f32 %v958, %v974
        %v991 = vadd.f32 %v959, %v975
        %v992 = vadd.f32 %v960, %v976
        %v993 = vadd.f32 %v961, %v977
        %v994 = vadd.f32 %v962, %v978
        %v995 = vadd.f32 %v963, %v979
        %v996 = vadd.f32 %v964, %v980
        %v997 = vmul.f32 %v981, 0.33333334
        %v998 = vmul.f32 %v982, 0.33333334
        %v999 = vmul.f32 %v983, 0.33333334
        %v1000 = vmul.f32 %v984, 0.33333334
        %v1001 = vmul.f32 %v985, 0.33333334
        %v1002 = vmul.f32 %v986, 0.33333334
        %v1003 = vmul.f32 %v987, 0.33333334
        %v1004 = vmul.f32 %v988, 0.33333334
        %v1005 = vmul.f32 %v989, 0.33333334
        %v1006 = vmul.f32 %v990, 0.33333334
        %v1007 = vmul.f32 %v991, 0.33333334
        %v1008 = vmul.f32 %v992, 0.33333334
        %v1009 = vmul.f32 %v993, 0.33333334
        %v1010 = vmul.f32 %v994, 0.33333334
        %v1011 = vmul.f32 %v995, 0.33333334
        %v1012 = vmul.f32 %v996, 0.33333334
        %1013 = vst.msk [vmem:[%s274] sm:$0xff] %vm881, %v997
        %1014 = vst.msk [vmem:[%s274 + $0x8] sm:$0xff] %vm881, %v998
        %1015 = vst.msk [vmem:[%s274 + $0x10] sm:$0xff] %vm881, %v999
        %1016 = vst.msk [vmem:[%s274 + $0x18] sm:$0xff] %vm881, %v1000
        %1017 = vst.msk [vmem:[%s274 + $0x20] sm:$0xff] %vm881, %v1001
        %1018 = vst.msk [vmem:[%s274 + $0x28] sm:$0xff] %vm881, %v1002
        %1019 = vst.msk [vmem:[%s274 + $0x30] sm:$0xff] %vm881, %v1003
        %1020 = vst.msk [vmem:[%s274 + $0x38] sm:$0xff] %vm881, %v1004
        %1021 = vst.msk [vmem:[%s274 + $0x40] sm:$0xff] %vm881, %v1005
        %1022 = vst.msk [vmem:[%s274 + $0x48] sm:$0xff] %vm881, %v1006
        %1023 = vst.msk [vmem:[%s274 + $0x50] sm:$0xff] %vm881, %v1007
        %1024 = vst.msk [vmem:[%s274 + $0x58] sm:$0xff] %vm881, %v1008
        %1025 = vst.msk [vmem:[%s274 + $0x60] sm:$0xff] %vm881, %v1009
        %1026 = vst.msk [vmem:[%s274 + $0x68] sm:$0xff] %vm881, %v1010
        %1027 = vst.msk [vmem:[%s274 + $0x70] sm:$0xff] %vm881, %v1011
        %1028 = vst.msk [vmem:[%s274 + $0x78] sm:$0xff] %vm881, %v1012
      $region44: #{lightgcn_propagate.3} parent=35 // pred_fallthru
        _
      %s1029 = smul.u32 16, %s19
      %p1030 = scmp.lt.s32.totalorder %s1029, 47
      %s1031 = scalar_select %p1030, %s1029, 47
      %s1032 = smul.addr %s1031, 8
      %s1033 = scalar_lea.vmem %s4, %s1032
      // Predicated region
      $region45: #{lightgcn_propagate.3} parent=35 // pred_check
        %p1034 = pneg %p146
      $region46: #{lightgcn_propagate.3} parent=35 // pred_check_branch
        %1036 = sbr.rel (%p1034) target = $region48
      $region47: #{lightgcn_propagate.3} parent=35 // pred_region
        %s1037 = smul.u32 16, %s19
      $region48: #{lightgcn_propagate.3} parent=35 // pred_fallthru
        _
    $region36: #{lightgcn_propagate.3} parent=5 // pred_fallthru
      _
    %p1038 = scmp.le.s32.totalorder 2, %s10
    // Predicated region
    $region49: #{lightgcn_propagate.3} parent=5 // pred_check
      %p1039 = pneg %p1038
    $region50: #{lightgcn_propagate.3} parent=5 // pred_check_branch
      %1041 = sbr.rel (%p1039) target = $region52
    $region51: #{lightgcn_propagate.3} parent=5 // pred_region
      %s1042 = ssub.s32 %s10, 2
      // Predicated region
      $region53: #{lightgcn_propagate.3} parent=51 // pred_check
        %p1043 = pneg %p152
      $region54: #{lightgcn_propagate.3} parent=51 // pred_check_branch
        %1045 = sbr.rel (%p1043) target = $region56
      $region55: #{lightgcn_propagate.3} parent=51 // pred_region
        %s1046 = smul.u32 16, %s21
        %p1047 = scmp.lt.s32.totalorder %s1046, 47
        %s1048 = scalar_select %p1047, %s1046, 47
        %s1049 = smul.addr %s1048, 8
        %s1050 = scalar_lea.vmem %s4, %s1049
      $region56: #{lightgcn_propagate.3} parent=51 // pred_fallthru
        _
    $region52: #{lightgcn_propagate.3} parent=5 // pred_fallthru
      _
  $region6: #{lightgcn_propagate.3} parent=0 // loop_footer
    %s14 = sadd.s32 1, %s10
  $region7: #{lightgcn_propagate.3} parent=0 // loop_footer_branch
    %9 = sbr.rel target = $region3
  $region8: #{lightgcn_propagate.3} parent=0 // loop_exit
    _

</llo_original>
